<compile_context>
chip_gen: v5e
topology: v5e:2x2
jax: 0.10.0
libtpu: 0.0.40
codegen_flags: <defaults>
</compile_context>

<pallas_src>
import functools

import jax
import jax.numpy as jnp
from jax.experimental import pallas as pl
from jax.experimental.pallas import tpu as pltpu


_INV_SQRT2 = 0.7071067811865476


def _gelu(x):
    # exact (erf) GELU == torch.nn.GELU() default; multiply, no divide.
    return 0.5 * x * (1.0 + jax.lax.erf(x * _INV_SQRT2))


def _round_up(n, m):
    return ((n + m - 1) // m) * m


def residual_block_kernel(
    x_ref, proj_ref, wf_ref, w1_ref, b1_ref, w2_ref, b2r_ref,
    o_ref, taps_ref, *, W, HW, HW_p, dilation, eps, c_in_p, c_out_p, bg,
):
    d = dilation
    inv_hw = 1.0 / HW

    # ---- hoisted im2col border masks (invariant across taps and images) ----
    pos = jax.lax.broadcasted_iota(jnp.int32, (c_in_p, HW_p), 1)
    col = pos % W
    offs = [-d, 0, d]
    masks = {}
    for di in offs:
        for dj in offs:
            if di == 0 and dj == 0:
                continue
            row_ok = jnp.logical_and(pos + di * W >= 0, pos + di * W < HW)
            col_ok = jnp.logical_and(col + dj >= 0, col + dj < W)
            masks[(di, dj)] = jnp.logical_and(row_ok, col_ok)
    valid = (pos < HW) if HW_p != HW else None

    # ---- per image: InstanceNorm2d (affine=False) + im2col into the fused
    # RHS scratch: rows [0, 9C) = taps of norm(x), rows [9C, 10C) = raw x. ----
    for b in range(bg):
        lo = b * HW_p
        x = x_ref[b]                                     # (c_in_p, HW_p)
        mean = jnp.sum(x, axis=1, keepdims=True) * inv_hw
        xc = x - mean
        if valid is not None:
            xc = jnp.where(valid, xc, 0.0)               # keep padded lanes 0
        var = jnp.sum(xc * xc, axis=1, keepdims=True) * inv_hw
        xn = xc * jax.lax.rsqrt(var + eps)

        t = 0
        for di in offs:
            for dj in offs:
                off = di * W + dj
                if off == 0:
                    tap = xn
                else:
                    shifted = pltpu.roll(xn, shift=(-off) % HW_p, axis=1)
                    tap = jnp.where(masks[(di, dj)], shifted, 0.0)
                taps_ref[t * c_in_p:(t + 1) * c_in_p, lo:lo + HW_p] = tap
                t += 1
        # raw (un-normalized) x rows drive the fused residual 1x1 conv
        taps_ref[9 * c_in_p:10 * c_in_p, lo:lo + HW_p] = x

    # ---- ONE block-diagonal MXU matmul: [[W3, 0], [0, Wr]] @ [taps; x] ----
    fused = jnp.dot(wf_ref[...], taps_ref[...],
                    preferred_element_type=jnp.float32)
    hid = fused[:c_out_p, :]
    res = fused[c_out_p:, :]

    # ---- timestep projection (te@wt + bt + b3), pre-folded, per image ----
    if bg == 1:
        hid = hid + proj_ref[0]
    else:
        hid = jnp.concatenate(
            [hid[:, b * HW_p:(b + 1) * HW_p] + proj_ref[b] for b in range(bg)],
            axis=1)

    # ---- out_fn: GELU -> 1x1 conv -> GELU -> 1x1 conv ----
    h = _gelu(hid)
    h = jnp.dot(w1_ref[...], h, preferred_element_type=jnp.float32) + b1_ref[...]
    h = _gelu(h)
    h = jnp.dot(w2_ref[...], h, preferred_element_type=jnp.float32)

    out = h + res + b2r_ref[...]                         # (b2 + br) folded
    for b in range(bg):                                  # lane-dense stores
        o_ref[b] = out[:, b * HW_p:(b + 1) * HW_p].astype(o_ref.dtype)


def residual_block(x_nchw, te_nchw, params, *, dilation, batch_per_step=None):
    B, C_in, H, W = x_nchw.shape
    HW = H * W
    C_out = params["b3"].shape[-1]
    C_hid = params["b1"].shape[-1]

    C_in_p = _round_up(C_in, 8)
    C_out_p = _round_up(C_out, 8)
    C_hid_p = _round_up(C_hid, 8)
    HW_p = _round_up(HW, 128)          # lane-dense stores for any H, W

    # Grid / batch-fold: 2 grid steps when B is even (uses both v7x TCs, caps
    # per-step overhead at 2 on 1-TC v5e/v6e); each step folds Bg images onto
    # the lane axis of every matmul.
    if batch_per_step is None:
        batch_per_step = B // 2 if (B % 2 == 0 and B >= 2) else 1
    assert B % batch_per_step == 0
    Bg = batch_per_step
    n_steps = B // Bg

    f32 = jnp.float32

    # ---- activations: flatten spatial, zero-pad channels + lanes ----
    x_flat = x_nchw.astype(f32).reshape(B, C_in, HW)
    x_flat = jnp.pad(x_flat, ((0, 0), (0, C_in_p - C_in), (0, HW_p - HW)))

    # ---- timestep projection folded with both conv biases: te@wt + bt + b3 ----
    b3 = params["b3"].reshape(1, C_out)
    if te_nchw is not None and "wt" in params:
        te = te_nchw[:, :, 0, 0].astype(f32)                      # (B, C_t)
        proj = te @ params["wt"] + params["bt"].reshape(1, C_out) + b3
    else:
        proj = jnp.broadcast_to(b3, (B, C_out))
    proj_p = jnp.zeros((B, C_out_p, 1), f32).at[:, :C_out, 0].set(proj)

    # ---- residual 1x1 conv (or Identity when d_in == d_out) ----
    if "wr" in params:
        wr_t = params["wr"].T.astype(f32)                         # (C_out, C_in)
        br = params["br"].reshape(1, C_out)
    else:
        wr_t = jnp.eye(C_out, C_in, dtype=f32)
        br = jnp.zeros((1, C_out), f32)

    # ---- fused block-diagonal weight: [[W3(im2col), 0], [0, Wr]] ----
    w3 = params["w3"].reshape(9, C_in, C_out)
    w3t = jnp.zeros((9, C_in_p, C_out_p), f32).at[:, :C_in, :C_out].set(w3)
    w3t = jnp.transpose(w3t, (2, 0, 1)).reshape(C_out_p, 9 * C_in_p)
    wf = jnp.zeros((2 * C_out_p, 10 * C_in_p), f32)
    wf = wf.at[:C_out_p, :9 * C_in_p].set(w3t)
    wf = wf.at[C_out_p:C_out_p + C_out, 9 * C_in_p:9 * C_in_p + C_in].set(wr_t)

    # ---- out_fn weights, biases folded / zero-padded to sublane multiples ----
    w1t = jnp.zeros((C_hid_p, C_out_p), f32).at[:C_hid, :C_out].set(params["w1"].T)
    b1 = jnp.zeros((C_hid_p, 1), f32).at[:C_hid, 0].set(params["b1"].reshape(C_hid))
    w2t = jnp.zeros((C_out_p, C_hid_p), f32).at[:C_out, :C_hid].set(params["w2"].T)
    b2r = jnp.zeros((C_out_p, 1), f32).at[:C_out, 0].set(
        (params["b2"] + br).reshape(C_out))

    kernel = functools.partial(
        residual_block_kernel, W=W, HW=HW, HW_p=HW_p, dilation=dilation,
        eps=1e-5, c_in_p=C_in_p, c_out_p=C_out_p, bg=Bg)

    full2 = lambda s: (0, 0)            # weights: whole array every grid step

    # VMEM budget: double-buffered in/out blocks + the fused-RHS scratch.
    blk_bytes = 4 * (Bg * C_in_p * HW_p + Bg * C_out_p + wf.size + w1t.size
                     + b1.size + w2t.size + b2r.size + Bg * C_out_p * HW_p)
    scratch_bytes = 4 * 10 * C_in_p * Bg * HW_p
    vmem_limit = int(min(max(2 * (2 * blk_bytes + scratch_bytes), 16 * 2**20),
                         48 * 2**20))           # safe on v5e/v6e/v7x

    n_tot = B * HW_p
    flops = 2 * n_tot * ((2 * C_out_p) * (10 * C_in_p)
                         + C_hid_p * C_out_p + C_out_p * C_hid_p)
    transcendentals = n_tot * (C_out_p + C_hid_p)                 # erf count
    bytes_accessed = 4 * (x_flat.size + proj_p.size + B * C_out_p * HW_p
                          + wf.size + w1t.size + b1.size + w2t.size + b2r.size)

    out_flat = pl.pallas_call(
        kernel,
        out_shape=jax.ShapeDtypeStruct((B, C_out_p, HW_p), f32),
        grid_spec=pltpu.PrefetchScalarGridSpec(
            num_scalar_prefetch=0,
            grid=(n_steps,),
            in_specs=[
                pl.BlockSpec((Bg, C_in_p, HW_p), lambda s: (s, 0, 0)),   # x
                pl.BlockSpec((Bg, C_out_p, 1), lambda s: (s, 0, 0)),     # proj
                pl.BlockSpec((2 * C_out_p, 10 * C_in_p), full2),  # [[w3,0],[0,wr]]
                pl.BlockSpec((C_hid_p, C_out_p), full2),          # w1
                pl.BlockSpec((C_hid_p, 1), full2),                # b1
                pl.BlockSpec((C_out_p, C_hid_p), full2),          # w2
                pl.BlockSpec((C_out_p, 1), full2),                # b2 + br
            ],
            out_specs=pl.BlockSpec((Bg, C_out_p, HW_p), lambda s: (s, 0, 0)),
            scratch_shapes=[
                pltpu.VMEM((10 * C_in_p, Bg * HW_p), f32),   # [9 taps ; raw x]
            ],
        ),
        compiler_params=pltpu.CompilerParams(
            dimension_semantics=("parallel",),
            vmem_limit_bytes=vmem_limit),
        cost_estimate=pl.CostEstimate(
            flops=flops, transcendentals=transcendentals,
            bytes_accessed=bytes_accessed),
    )(x_flat, proj_p, wf, w1t, b1, w2t, b2r)

    # glue back to NCHW (drop channel/lane padding, un-flatten spatial)
    return out_flat[:, :C_out, :HW].reshape(B, C_out, H, W)


def reference(x_nchw, te_nchw, params, *, dilation):
    """Pure-JAX reference (lax conv) for correctness checking."""
    x = jnp.transpose(x_nchw, (0, 2, 3, 1))  # NHWC
    C_in = x.shape[-1]
    C_out = params["b3"].shape[-1]
    mean = x.mean(axis=(1, 2), keepdims=True)
    var = ((x - mean) ** 2).mean(axis=(1, 2), keepdims=True)
    xn = (x - mean) / jnp.sqrt(var + 1e-5)
    w3_hwio = params["w3"].reshape(3, 3, C_in, C_out)
    h = jax.lax.conv_general_dilated(
        xn, w3_hwio, (1, 1), "SAME", rhs_dilation=(dilation, dilation),
        dimension_numbers=("NHWC", "HWIO", "NHWC"))
    h = h + params["b3"]
    te = te_nchw[:, :, 0, 0]
    proj = te @ params["wt"] + params["bt"]
    h = h + proj[:, None, None, :]
    h = _gelu(h)
    h = jnp.einsum("bhwc,cd->bhwd", h, params["w1"]) + params["b1"]
    h = _gelu(h)
    h = jnp.einsum("bhwc,cd->bhwd", h, params["w2"]) + params["b2"]
    res = jnp.einsum("bhwc,cd->bhwd", x, params["wr"]) + params["br"]
    return jnp.transpose(h + res, (0, 3, 1, 2))  # NCHW


if __name__ == "__main__":
    def make_params(key, d_in, d_out, d_hid, d_t):
        ks = jax.random.split(key, 10)
        return {
            # 3x3 conv weight as HWIO flattened to (9*C_in, C_out); tap t=i*3+j
            "w3": 0.1 * jax.random.normal(ks[0], (9 * d_in, d_out), jnp.float32),
            "b3": 0.1 * jax.random.normal(ks[1], (1, d_out), jnp.float32),
            "wt": 0.1 * jax.random.normal(ks[2], (d_t, d_out), jnp.float32),
            "bt": 0.1 * jax.random.normal(ks[3], (1, d_out), jnp.float32),
            "w1": 0.1 * jax.random.normal(ks[4], (d_out, d_hid), jnp.float32),
            "b1": 0.1 * jax.random.normal(ks[5], (1, d_hid), jnp.float32),
            "w2": 0.1 * jax.random.normal(ks[6], (d_hid, d_out), jnp.float32),
            "b2": 0.1 * jax.random.normal(ks[7], (1, d_out), jnp.float32),
            # residual_fn: d_in != d_out -> 1x1 conv
            "wr": 0.1 * jax.random.normal(ks[8], (d_in, d_out), jnp.float32),
            "br": 0.1 * jax.random.normal(ks[9], (1, d_out), jnp.float32),
        }

    key = jax.random.PRNGKey(0)

    # case 1: module config d_in=4, d_out=8, factor=2, dilation=2, d_t=6,
    #         B=2, H=W=16  (HW already a lane multiple; Bg=1, grid=2)
    k1, k2, k3, key = jax.random.split(key, 4)
    B, d_in, d_out, fac, dil, d_t, H, W = 2, 4, 8, 2, 2, 6, 16, 16
    params = make_params(k1, d_in, d_out, d_out * fac, d_t)
    x = jax.random.normal(k2, (B, d_in, H, W), jnp.float32)
    te = jax.random.normal(k3, (B, d_t, 1, 1), jnp.float32)
    out = jax.block_until_ready(residual_block(x, te, params, dilation=dil))
    ref = jax.block_until_ready(reference(x, te, params, dilation=dil))
    assert out.shape == (B, d_out, H, W)
    assert jnp.allclose(out, ref, rtol=1e-3, atol=1e-3), (
        float(jnp.max(jnp.abs(out - ref))))

    # case 2: exercises batch folding (Bg=2), odd channels (C_in=3 padded to 8)
    #         and lane-padding (HW=120 -> 128), dilation=1
    k1, k2, k3, key = jax.random.split(key, 4)
    B, d_in, d_out, fac, dil, d_t, H, W = 4, 3, 8, 2, 1, 5, 10, 12
    params = make_params(k1, d_in, d_out, d_out * fac, d_t)
    x = jax.random.normal(k2, (B, d_in, H, W), jnp.float32)
    te = jax.random.normal(k3, (B, d_t, 1, 1), jnp.float32)
    out = jax.block_until_ready(residual_block(x, te, params, dilation=dil))
    ref = jax.block_until_ready(reference(x, te, params, dilation=dil))
    assert out.shape == (B, d_out, H, W)
    assert jnp.allclose(out, ref, rtol=1e-3, atol=1e-3), (
        float(jnp.max(jnp.abs(out - ref))))

    print("KERNEL_OK")
</pallas_src>

<mosaic_0001>
module attributes {stable_mosaic.version = 11 : i64} {
  func.func @residual_block_kernel(%arg0: i32, %arg1: memref<1x8x256xf32, #tpu.memory_space<vmem>>, %arg2: memref<1x8x1xf32, #tpu.memory_space<vmem>>, %arg3: memref<16x80xf32, #tpu.memory_space<vmem>>, %arg4: memref<16x8xf32, #tpu.memory_space<vmem>>, %arg5: memref<16x1xf32, #tpu.memory_space<vmem>>, %arg6: memref<8x16xf32, #tpu.memory_space<vmem>>, %arg7: memref<8x1xf32, #tpu.memory_space<vmem>>, %arg8: memref<1x8x256xf32, #tpu.memory_space<vmem>>, %arg9: memref<80x256xf32, #tpu.memory_space<vmem>>) attributes {dimension_semantics = [#tpu.dimension_semantics<parallel>], iteration_bounds = array<i64: 2>, scalar_prefetch = 0 : i64, scratch_operands = 1 : i64, tpu.core_type = #tpu.core_type<tc>, window_params = [{transform_indices = @transform_0, window_bounds = array<i64: 1, 8, 256>}, {transform_indices = @transform_1, window_bounds = array<i64: 1, 8, 1>}, {pipeline_mode = #tpu.pipeline_mode<synchronous>, transform_indices = @transform_2, window_bounds = array<i64: 16, 80>}, {pipeline_mode = #tpu.pipeline_mode<synchronous>, transform_indices = @transform_3, window_bounds = array<i64: 16, 8>}, {pipeline_mode = #tpu.pipeline_mode<synchronous>, transform_indices = @transform_4, window_bounds = array<i64: 16, 1>}, {pipeline_mode = #tpu.pipeline_mode<synchronous>, transform_indices = @transform_5, window_bounds = array<i64: 8, 16>}, {pipeline_mode = #tpu.pipeline_mode<synchronous>, transform_indices = @transform_6, window_bounds = array<i64: 8, 1>}, {transform_indices = @transform_7, window_bounds = array<i64: 1, 8, 256>}]} {
    %0 = tpu.iota {dimensions = array<i32: 1>} : vector<8x256xi32>
    %c16_i32 = arith.constant 16 : i32
    %c0_i32 = arith.constant 0 : i32
    %1 = arith.cmpi eq, %c16_i32, %c0_i32 : i32
    %c1_i32 = arith.constant 1 : i32
    %2 = arith.select %1, %c1_i32, %c16_i32 : i32
    %3 = vector.broadcast %2 : i32 to vector<8x256xi32>
    %4 = arith.remsi %0, %3 : vector<8x256xi32>
    %c0_i32_0 = arith.constant 0 : i32
    %5 = vector.broadcast %c0_i32_0 : i32 to vector<8x256xi32>
    %6 = arith.cmpi ne, %4, %5 : vector<8x256xi32>
    %c0_i32_1 = arith.constant 0 : i32
    %7 = vector.broadcast %c0_i32_1 : i32 to vector<8x256xi32>
    %8 = arith.cmpi slt, %4, %7 : vector<8x256xi32>
    %c0_i32_2 = arith.constant 0 : i32
    %9 = arith.cmpi slt, %2, %c0_i32_2 : i32
    %10 = vector.broadcast %9 : i1 to vector<8x256xi1>
    %11 = vector.broadcast %10 : vector<8x256xi1> to vector<8x256xi1>
    %12 = arith.xori %8, %11 : vector<8x256xi1>
    %13 = arith.andi %12, %6 : vector<8x256xi1>
    %14 = vector.broadcast %2 : i32 to vector<8x256xi32>
    %15 = arith.addi %4, %14 : vector<8x256xi32>
    %16 = arith.select %13, %15, %4 : vector<8x256xi1>, vector<8x256xi32>
    %c-32_i32 = arith.constant -32 : i32
    %17 = vector.broadcast %c-32_i32 : i32 to vector<8x256xi32>
    %18 = arith.addi %0, %17 : vector<8x256xi32>
    %c0_i32_3 = arith.constant 0 : i32
    %19 = vector.broadcast %c0_i32_3 : i32 to vector<8x256xi32>
    %20 = arith.cmpi sge, %18, %19 : vector<8x256xi32>
    %c-32_i32_4 = arith.constant -32 : i32
    %21 = vector.broadcast %c-32_i32_4 : i32 to vector<8x256xi32>
    %22 = arith.addi %0, %21 : vector<8x256xi32>
    %c256_i32 = arith.constant 256 : i32
    %23 = vector.broadcast %c256_i32 : i32 to vector<8x256xi32>
    %24 = arith.cmpi slt, %22, %23 : vector<8x256xi32>
    %25 = arith.andi %20, %24 : vector<8x256xi1>
    %c-2_i32 = arith.constant -2 : i32
    %26 = vector.broadcast %c-2_i32 : i32 to vector<8x256xi32>
    %27 = arith.addi %16, %26 : vector<8x256xi32>
    %c0_i32_5 = arith.constant 0 : i32
    %28 = vector.broadcast %c0_i32_5 : i32 to vector<8x256xi32>
    %29 = arith.cmpi sge, %27, %28 : vector<8x256xi32>
    %c-2_i32_6 = arith.constant -2 : i32
    %30 = vector.broadcast %c-2_i32_6 : i32 to vector<8x256xi32>
    %31 = arith.addi %16, %30 : vector<8x256xi32>
    %c16_i32_7 = arith.constant 16 : i32
    %32 = vector.broadcast %c16_i32_7 : i32 to vector<8x256xi32>
    %33 = arith.cmpi slt, %31, %32 : vector<8x256xi32>
    %34 = arith.andi %29, %33 : vector<8x256xi1>
    %35 = arith.andi %25, %34 : vector<8x256xi1>
    %c-32_i32_8 = arith.constant -32 : i32
    %36 = vector.broadcast %c-32_i32_8 : i32 to vector<8x256xi32>
    %37 = arith.addi %0, %36 : vector<8x256xi32>
    %c0_i32_9 = arith.constant 0 : i32
    %38 = vector.broadcast %c0_i32_9 : i32 to vector<8x256xi32>
    %39 = arith.cmpi sge, %37, %38 : vector<8x256xi32>
    %c-32_i32_10 = arith.constant -32 : i32
    %40 = vector.broadcast %c-32_i32_10 : i32 to vector<8x256xi32>
    %41 = arith.addi %0, %40 : vector<8x256xi32>
    %c256_i32_11 = arith.constant 256 : i32
    %42 = vector.broadcast %c256_i32_11 : i32 to vector<8x256xi32>
    %43 = arith.cmpi slt, %41, %42 : vector<8x256xi32>
    %44 = arith.andi %39, %43 : vector<8x256xi1>
    %c0_i32_12 = arith.constant 0 : i32
    %45 = vector.broadcast %c0_i32_12 : i32 to vector<8x256xi32>
    %46 = arith.addi %16, %45 : vector<8x256xi32>
    %c0_i32_13 = arith.constant 0 : i32
    %47 = vector.broadcast %c0_i32_13 : i32 to vector<8x256xi32>
    %48 = arith.cmpi sge, %46, %47 : vector<8x256xi32>
    %c0_i32_14 = arith.constant 0 : i32
    %49 = vector.broadcast %c0_i32_14 : i32 to vector<8x256xi32>
    %50 = arith.addi %16, %49 : vector<8x256xi32>
    %c16_i32_15 = arith.constant 16 : i32
    %51 = vector.broadcast %c16_i32_15 : i32 to vector<8x256xi32>
    %52 = arith.cmpi slt, %50, %51 : vector<8x256xi32>
    %53 = arith.andi %48, %52 : vector<8x256xi1>
    %54 = arith.andi %44, %53 : vector<8x256xi1>
    %c-32_i32_16 = arith.constant -32 : i32
    %55 = vector.broadcast %c-32_i32_16 : i32 to vector<8x256xi32>
    %56 = arith.addi %0, %55 : vector<8x256xi32>
    %c0_i32_17 = arith.constant 0 : i32
    %57 = vector.broadcast %c0_i32_17 : i32 to vector<8x256xi32>
    %58 = arith.cmpi sge, %56, %57 : vector<8x256xi32>
    %c-32_i32_18 = arith.constant -32 : i32
    %59 = vector.broadcast %c-32_i32_18 : i32 to vector<8x256xi32>
    %60 = arith.addi %0, %59 : vector<8x256xi32>
    %c256_i32_19 = arith.constant 256 : i32
    %61 = vector.broadcast %c256_i32_19 : i32 to vector<8x256xi32>
    %62 = arith.cmpi slt, %60, %61 : vector<8x256xi32>
    %63 = arith.andi %58, %62 : vector<8x256xi1>
    %c2_i32 = arith.constant 2 : i32
    %64 = vector.broadcast %c2_i32 : i32 to vector<8x256xi32>
    %65 = arith.addi %16, %64 : vector<8x256xi32>
    %c0_i32_20 = arith.constant 0 : i32
    %66 = vector.broadcast %c0_i32_20 : i32 to vector<8x256xi32>
    %67 = arith.cmpi sge, %65, %66 : vector<8x256xi32>
    %c2_i32_21 = arith.constant 2 : i32
    %68 = vector.broadcast %c2_i32_21 : i32 to vector<8x256xi32>
    %69 = arith.addi %16, %68 : vector<8x256xi32>
    %c16_i32_22 = arith.constant 16 : i32
    %70 = vector.broadcast %c16_i32_22 : i32 to vector<8x256xi32>
    %71 = arith.cmpi slt, %69, %70 : vector<8x256xi32>
    %72 = arith.andi %67, %71 : vector<8x256xi1>
    %73 = arith.andi %63, %72 : vector<8x256xi1>
    %c0_i32_23 = arith.constant 0 : i32
    %74 = vector.broadcast %c0_i32_23 : i32 to vector<8x256xi32>
    %75 = arith.addi %0, %74 : vector<8x256xi32>
    %c0_i32_24 = arith.constant 0 : i32
    %76 = vector.broadcast %c0_i32_24 : i32 to vector<8x256xi32>
    %77 = arith.cmpi sge, %75, %76 : vector<8x256xi32>
    %c0_i32_25 = arith.constant 0 : i32
    %78 = vector.broadcast %c0_i32_25 : i32 to vector<8x256xi32>
    %79 = arith.addi %0, %78 : vector<8x256xi32>
    %c256_i32_26 = arith.constant 256 : i32
    %80 = vector.broadcast %c256_i32_26 : i32 to vector<8x256xi32>
    %81 = arith.cmpi slt, %79, %80 : vector<8x256xi32>
    %82 = arith.andi %77, %81 : vector<8x256xi1>
    %c-2_i32_27 = arith.constant -2 : i32
    %83 = vector.broadcast %c-2_i32_27 : i32 to vector<8x256xi32>
    %84 = arith.addi %16, %83 : vector<8x256xi32>
    %c0_i32_28 = arith.constant 0 : i32
    %85 = vector.broadcast %c0_i32_28 : i32 to vector<8x256xi32>
    %86 = arith.cmpi sge, %84, %85 : vector<8x256xi32>
    %c-2_i32_29 = arith.constant -2 : i32
    %87 = vector.broadcast %c-2_i32_29 : i32 to vector<8x256xi32>
    %88 = arith.addi %16, %87 : vector<8x256xi32>
    %c16_i32_30 = arith.constant 16 : i32
    %89 = vector.broadcast %c16_i32_30 : i32 to vector<8x256xi32>
    %90 = arith.cmpi slt, %88, %89 : vector<8x256xi32>
    %91 = arith.andi %86, %90 : vector<8x256xi1>
    %92 = arith.andi %82, %91 : vector<8x256xi1>
    %c0_i32_31 = arith.constant 0 : i32
    %93 = vector.broadcast %c0_i32_31 : i32 to vector<8x256xi32>
    %94 = arith.addi %0, %93 : vector<8x256xi32>
    %c0_i32_32 = arith.constant 0 : i32
    %95 = vector.broadcast %c0_i32_32 : i32 to vector<8x256xi32>
    %96 = arith.cmpi sge, %94, %95 : vector<8x256xi32>
    %c0_i32_33 = arith.constant 0 : i32
    %97 = vector.broadcast %c0_i32_33 : i32 to vector<8x256xi32>
    %98 = arith.addi %0, %97 : vector<8x256xi32>
    %c256_i32_34 = arith.constant 256 : i32
    %99 = vector.broadcast %c256_i32_34 : i32 to vector<8x256xi32>
    %100 = arith.cmpi slt, %98, %99 : vector<8x256xi32>
    %101 = arith.andi %96, %100 : vector<8x256xi1>
    %c2_i32_35 = arith.constant 2 : i32
    %102 = vector.broadcast %c2_i32_35 : i32 to vector<8x256xi32>
    %103 = arith.addi %16, %102 : vector<8x256xi32>
    %c0_i32_36 = arith.constant 0 : i32
    %104 = vector.broadcast %c0_i32_36 : i32 to vector<8x256xi32>
    %105 = arith.cmpi sge, %103, %104 : vector<8x256xi32>
    %c2_i32_37 = arith.constant 2 : i32
    %106 = vector.broadcast %c2_i32_37 : i32 to vector<8x256xi32>
    %107 = arith.addi %16, %106 : vector<8x256xi32>
    %c16_i32_38 = arith.constant 16 : i32
    %108 = vector.broadcast %c16_i32_38 : i32 to vector<8x256xi32>
    %109 = arith.cmpi slt, %107, %108 : vector<8x256xi32>
    %110 = arith.andi %105, %109 : vector<8x256xi1>
    %111 = arith.andi %101, %110 : vector<8x256xi1>
    %c32_i32 = arith.constant 32 : i32
    %112 = vector.broadcast %c32_i32 : i32 to vector<8x256xi32>
    %113 = arith.addi %0, %112 : vector<8x256xi32>
    %c0_i32_39 = arith.constant 0 : i32
    %114 = vector.broadcast %c0_i32_39 : i32 to vector<8x256xi32>
    %115 = arith.cmpi sge, %113, %114 : vector<8x256xi32>
    %c32_i32_40 = arith.constant 32 : i32
    %116 = vector.broadcast %c32_i32_40 : i32 to vector<8x256xi32>
    %117 = arith.addi %0, %116 : vector<8x256xi32>
    %c256_i32_41 = arith.constant 256 : i32
    %118 = vector.broadcast %c256_i32_41 : i32 to vector<8x256xi32>
    %119 = arith.cmpi slt, %117, %118 : vector<8x256xi32>
    %120 = arith.andi %115, %119 : vector<8x256xi1>
    %c-2_i32_42 = arith.constant -2 : i32
    %121 = vector.broadcast %c-2_i32_42 : i32 to vector<8x256xi32>
    %122 = arith.addi %16, %121 : vector<8x256xi32>
    %c0_i32_43 = arith.constant 0 : i32
    %123 = vector.broadcast %c0_i32_43 : i32 to vector<8x256xi32>
    %124 = arith.cmpi sge, %122, %123 : vector<8x256xi32>
    %c-2_i32_44 = arith.constant -2 : i32
    %125 = vector.broadcast %c-2_i32_44 : i32 to vector<8x256xi32>
    %126 = arith.addi %16, %125 : vector<8x256xi32>
    %c16_i32_45 = arith.constant 16 : i32
    %127 = vector.broadcast %c16_i32_45 : i32 to vector<8x256xi32>
    %128 = arith.cmpi slt, %126, %127 : vector<8x256xi32>
    %129 = arith.andi %124, %128 : vector<8x256xi1>
    %130 = arith.andi %120, %129 : vector<8x256xi1>
    %c32_i32_46 = arith.constant 32 : i32
    %131 = vector.broadcast %c32_i32_46 : i32 to vector<8x256xi32>
    %132 = arith.addi %0, %131 : vector<8x256xi32>
    %c0_i32_47 = arith.constant 0 : i32
    %133 = vector.broadcast %c0_i32_47 : i32 to vector<8x256xi32>
    %134 = arith.cmpi sge, %132, %133 : vector<8x256xi32>
    %c32_i32_48 = arith.constant 32 : i32
    %135 = vector.broadcast %c32_i32_48 : i32 to vector<8x256xi32>
    %136 = arith.addi %0, %135 : vector<8x256xi32>
    %c256_i32_49 = arith.constant 256 : i32
    %137 = vector.broadcast %c256_i32_49 : i32 to vector<8x256xi32>
    %138 = arith.cmpi slt, %136, %137 : vector<8x256xi32>
    %139 = arith.andi %134, %138 : vector<8x256xi1>
    %c0_i32_50 = arith.constant 0 : i32
    %140 = vector.broadcast %c0_i32_50 : i32 to vector<8x256xi32>
    %141 = arith.addi %16, %140 : vector<8x256xi32>
    %c0_i32_51 = arith.constant 0 : i32
    %142 = vector.broadcast %c0_i32_51 : i32 to vector<8x256xi32>
    %143 = arith.cmpi sge, %141, %142 : vector<8x256xi32>
    %c0_i32_52 = arith.constant 0 : i32
    %144 = vector.broadcast %c0_i32_52 : i32 to vector<8x256xi32>
    %145 = arith.addi %16, %144 : vector<8x256xi32>
    %c16_i32_53 = arith.constant 16 : i32
    %146 = vector.broadcast %c16_i32_53 : i32 to vector<8x256xi32>
    %147 = arith.cmpi slt, %145, %146 : vector<8x256xi32>
    %148 = arith.andi %143, %147 : vector<8x256xi1>
    %149 = arith.andi %139, %148 : vector<8x256xi1>
    %c32_i32_54 = arith.constant 32 : i32
    %150 = vector.broadcast %c32_i32_54 : i32 to vector<8x256xi32>
    %151 = arith.addi %0, %150 : vector<8x256xi32>
    %c0_i32_55 = arith.constant 0 : i32
    %152 = vector.broadcast %c0_i32_55 : i32 to vector<8x256xi32>
    %153 = arith.cmpi sge, %151, %152 : vector<8x256xi32>
    %c32_i32_56 = arith.constant 32 : i32
    %154 = vector.broadcast %c32_i32_56 : i32 to vector<8x256xi32>
    %155 = arith.addi %0, %154 : vector<8x256xi32>
    %c256_i32_57 = arith.constant 256 : i32
    %156 = vector.broadcast %c256_i32_57 : i32 to vector<8x256xi32>
    %157 = arith.cmpi slt, %155, %156 : vector<8x256xi32>
    %158 = arith.andi %153, %157 : vector<8x256xi1>
    %c2_i32_58 = arith.constant 2 : i32
    %159 = vector.broadcast %c2_i32_58 : i32 to vector<8x256xi32>
    %160 = arith.addi %16, %159 : vector<8x256xi32>
    %c0_i32_59 = arith.constant 0 : i32
    %161 = vector.broadcast %c0_i32_59 : i32 to vector<8x256xi32>
    %162 = arith.cmpi sge, %160, %161 : vector<8x256xi32>
    %c2_i32_60 = arith.constant 2 : i32
    %163 = vector.broadcast %c2_i32_60 : i32 to vector<8x256xi32>
    %164 = arith.addi %16, %163 : vector<8x256xi32>
    %c16_i32_61 = arith.constant 16 : i32
    %165 = vector.broadcast %c16_i32_61 : i32 to vector<8x256xi32>
    %166 = arith.cmpi slt, %164, %165 : vector<8x256xi32>
    %167 = arith.andi %162, %166 : vector<8x256xi1>
    %168 = arith.andi %158, %167 : vector<8x256xi1>
    %c0 = arith.constant 0 : index
    %c0_62 = arith.constant 0 : index
    %c0_63 = arith.constant 0 : index
    %169 = vector.load %arg1[%c0, %c0_62, %c0_63] : memref<1x8x256xf32, #tpu.memory_space<vmem>>, vector<1x8x256xf32>
    %170 = vector.shape_cast %169 : vector<1x8x256xf32> to vector<8x256xf32>
    %cst = arith.constant dense<0.000000e+00> : vector<8xf32>
    %171 = vector.multi_reduction <add>, %170, %cst [1] : vector<8x256xf32> to vector<8xf32>
    %172 = vector.shape_cast %171 : vector<8xf32> to vector<8x1xf32>
    %cst_64 = arith.constant 3.906250e-03 : f32
    %173 = vector.broadcast %cst_64 : f32 to vector<8x1xf32>
    %174 = arith.mulf %172, %173 : vector<8x1xf32>
    %175 = vector.broadcast %174 : vector<8x1xf32> to vector<8x256xf32>
    %176 = arith.subf %170, %175 : vector<8x256xf32>
    %177 = arith.mulf %176, %176 : vector<8x256xf32>
    %cst_65 = arith.constant dense<0.000000e+00> : vector<8xf32>
    %178 = vector.multi_reduction <add>, %177, %cst_65 [1] : vector<8x256xf32> to vector<8xf32>
    %179 = vector.shape_cast %178 : vector<8xf32> to vector<8x1xf32>
    %cst_66 = arith.constant 3.906250e-03 : f32
    %180 = vector.broadcast %cst_66 : f32 to vector<8x1xf32>
    %181 = arith.mulf %179, %180 : vector<8x1xf32>
    %cst_67 = arith.constant 9.99999974E-6 : f32
    %182 = vector.broadcast %cst_67 : f32 to vector<8x1xf32>
    %183 = arith.addf %181, %182 : vector<8x1xf32>
    %184 = math.rsqrt %183 : vector<8x1xf32>
    %185 = vector.broadcast %184 : vector<8x1xf32> to vector<8x256xf32>
    %186 = arith.mulf %176, %185 : vector<8x256xf32>
    %c34_i32 = arith.constant 34 : i32
    %187 = tpu.dynamic_rotate %186 by %c34_i32 dim 1 : vector<8x256xf32>, i32 -> vector<8x256xf32>
    %cst_68 = arith.constant 0.000000e+00 : f32
    %188 = vector.broadcast %cst_68 : f32 to vector<8x256xf32>
    %189 = arith.select %35, %187, %188 : vector<8x256xi1>, vector<8x256xf32>
    %c0_69 = arith.constant 0 : index
    %c0_70 = arith.constant 0 : index
    %190 = vector.load %arg9[%c0_69, %c0_70] : memref<80x256xf32, #tpu.memory_space<vmem>>, vector<8x256xf32>
    tpu.vector_store %arg9[%c0_69, %c0_70], %189 {strides = array<i32>} : memref<80x256xf32, #tpu.memory_space<vmem>>, vector<8x256xf32>,
    %c32_i32_71 = arith.constant 32 : i32
    %191 = tpu.dynamic_rotate %186 by %c32_i32_71 dim 1 : vector<8x256xf32>, i32 -> vector<8x256xf32>
    %cst_72 = arith.constant 0.000000e+00 : f32
    %192 = vector.broadcast %cst_72 : f32 to vector<8x256xf32>
    %193 = arith.select %54, %191, %192 : vector<8x256xi1>, vector<8x256xf32>
    %c8 = arith.constant 8 : index
    %c0_73 = arith.constant 0 : index
    %194 = vector.load %arg9[%c8, %c0_73] : memref<80x256xf32, #tpu.memory_space<vmem>>, vector<8x256xf32>
    tpu.vector_store %arg9[%c8, %c0_73], %193 {strides = array<i32>} : memref<80x256xf32, #tpu.memory_space<vmem>>, vector<8x256xf32>,
    %c30_i32 = arith.constant 30 : i32
    %195 = tpu.dynamic_rotate %186 by %c30_i32 dim 1 : vector<8x256xf32>, i32 -> vector<8x256xf32>
    %cst_74 = arith.constant 0.000000e+00 : f32
    %196 = vector.broadcast %cst_74 : f32 to vector<8x256xf32>
    %197 = arith.select %73, %195, %196 : vector<8x256xi1>, vector<8x256xf32>
    %c16 = arith.constant 16 : index
    %c0_75 = arith.constant 0 : index
    %198 = vector.load %arg9[%c16, %c0_75] : memref<80x256xf32, #tpu.memory_space<vmem>>, vector<8x256xf32>
    tpu.vector_store %arg9[%c16, %c0_75], %197 {strides = array<i32>} : memref<80x256xf32, #tpu.memory_space<vmem>>, vector<8x256xf32>,
    %c2_i32_76 = arith.constant 2 : i32
    %199 = tpu.dynamic_rotate %186 by %c2_i32_76 dim 1 : vector<8x256xf32>, i32 -> vector<8x256xf32>
    %cst_77 = arith.constant 0.000000e+00 : f32
    %200 = vector.broadcast %cst_77 : f32 to vector<8x256xf32>
    %201 = arith.select %92, %199, %200 : vector<8x256xi1>, vector<8x256xf32>
    %c24 = arith.constant 24 : index
    %c0_78 = arith.constant 0 : index
    %202 = vector.load %arg9[%c24, %c0_78] : memref<80x256xf32, #tpu.memory_space<vmem>>, vector<8x256xf32>
    tpu.vector_store %arg9[%c24, %c0_78], %201 {strides = array<i32>} : memref<80x256xf32, #tpu.memory_space<vmem>>, vector<8x256xf32>,
    %c32 = arith.constant 32 : index
    %c0_79 = arith.constant 0 : index
    %203 = vector.load %arg9[%c32, %c0_79] : memref<80x256xf32, #tpu.memory_space<vmem>>, vector<8x256xf32>
    tpu.vector_store %arg9[%c32, %c0_79], %186 {strides = array<i32>} : memref<80x256xf32, #tpu.memory_space<vmem>>, vector<8x256xf32>,
    %c254_i32 = arith.constant 254 : i32
    %204 = tpu.dynamic_rotate %186 by %c254_i32 dim 1 : vector<8x256xf32>, i32 -> vector<8x256xf32>
    %cst_80 = arith.constant 0.000000e+00 : f32
    %205 = vector.broadcast %cst_80 : f32 to vector<8x256xf32>
    %206 = arith.select %111, %204, %205 : vector<8x256xi1>, vector<8x256xf32>
    %c40 = arith.constant 40 : index
    %c0_81 = arith.constant 0 : index
    %207 = vector.load %arg9[%c40, %c0_81] : memref<80x256xf32, #tpu.memory_space<vmem>>, vector<8x256xf32>
    tpu.vector_store %arg9[%c40, %c0_81], %206 {strides = array<i32>} : memref<80x256xf32, #tpu.memory_space<vmem>>, vector<8x256xf32>,
    %c226_i32 = arith.constant 226 : i32
    %208 = tpu.dynamic_rotate %186 by %c226_i32 dim 1 : vector<8x256xf32>, i32 -> vector<8x256xf32>
    %cst_82 = arith.constant 0.000000e+00 : f32
    %209 = vector.broadcast %cst_82 : f32 to vector<8x256xf32>
    %210 = arith.select %130, %208, %209 : vector<8x256xi1>, vector<8x256xf32>
    %c48 = arith.constant 48 : index
    %c0_83 = arith.constant 0 : index
    %211 = vector.load %arg9[%c48, %c0_83] : memref<80x256xf32, #tpu.memory_space<vmem>>, vector<8x256xf32>
    tpu.vector_store %arg9[%c48, %c0_83], %210 {strides = array<i32>} : memref<80x256xf32, #tpu.memory_space<vmem>>, vector<8x256xf32>,
    %c224_i32 = arith.constant 224 : i32
    %212 = tpu.dynamic_rotate %186 by %c224_i32 dim 1 : vector<8x256xf32>, i32 -> vector<8x256xf32>
    %cst_84 = arith.constant 0.000000e+00 : f32
    %213 = vector.broadcast %cst_84 : f32 to vector<8x256xf32>
    %214 = arith.select %149, %212, %213 : vector<8x256xi1>, vector<8x256xf32>
    %c56 = arith.constant 56 : index
    %c0_85 = arith.constant 0 : index
    %215 = vector.load %arg9[%c56, %c0_85] : memref<80x256xf32, #tpu.memory_space<vmem>>, vector<8x256xf32>
    tpu.vector_store %arg9[%c56, %c0_85], %214 {strides = array<i32>} : memref<80x256xf32, #tpu.memory_space<vmem>>, vector<8x256xf32>,
    %c222_i32 = arith.constant 222 : i32
    %216 = tpu.dynamic_rotate %186 by %c222_i32 dim 1 : vector<8x256xf32>, i32 -> vector<8x256xf32>
    %cst_86 = arith.constant 0.000000e+00 : f32
    %217 = vector.broadcast %cst_86 : f32 to vector<8x256xf32>
    %218 = arith.select %168, %216, %217 : vector<8x256xi1>, vector<8x256xf32>
    %c64 = arith.constant 64 : index
    %c0_87 = arith.constant 0 : index
    %219 = vector.load %arg9[%c64, %c0_87] : memref<80x256xf32, #tpu.memory_space<vmem>>, vector<8x256xf32>
    tpu.vector_store %arg9[%c64, %c0_87], %218 {strides = array<i32>} : memref<80x256xf32, #tpu.memory_space<vmem>>, vector<8x256xf32>,
    %c72 = arith.constant 72 : index
    %c0_88 = arith.constant 0 : index
    %220 = vector.load %arg9[%c72, %c0_88] : memref<80x256xf32, #tpu.memory_space<vmem>>, vector<8x256xf32>
    tpu.vector_store %arg9[%c72, %c0_88], %170 {strides = array<i32>} : memref<80x256xf32, #tpu.memory_space<vmem>>, vector<8x256xf32>,
    %c0_89 = arith.constant 0 : index
    %c0_90 = arith.constant 0 : index
    %221 = vector.load %arg3[%c0_89, %c0_90] : memref<16x80xf32, #tpu.memory_space<vmem>>, vector<16x80xf32>
    %c0_91 = arith.constant 0 : index
    %c0_92 = arith.constant 0 : index
    %222 = vector.load %arg9[%c0_91, %c0_92] : memref<80x256xf32, #tpu.memory_space<vmem>>, vector<80x256xf32>
    %cst_93 = arith.constant dense<0.000000e+00> : vector<16x256xf32>
    %223 = tpu.matmul %221, %222, %cst_93 {dimension_numbers = #tpu.dot_dimension_numbers<[1], [0], [0], [1], [0, 0, 1, 1], [], []>} : vector<16x80xf32>, vector<80x256xf32>, vector<16x256xf32> -> vector<16x256xf32>
    %224 = vector.extract_strided_slice %223 {offsets = [0, 0], sizes = [8, 256], strides = [1, 1]} : vector<16x256xf32> to vector<8x256xf32>
    %225 = vector.extract_strided_slice %223 {offsets = [8, 0], sizes = [8, 256], strides = [1, 1]} : vector<16x256xf32> to vector<8x256xf32>
    %c0_94 = arith.constant 0 : index
    %c0_95 = arith.constant 0 : index
    %c0_96 = arith.constant 0 : index
    %226 = vector.load %arg2[%c0_94, %c0_95, %c0_96] : memref<1x8x1xf32, #tpu.memory_space<vmem>>, vector<1x8x1xf32>
    %227 = vector.shape_cast %226 : vector<1x8x1xf32> to vector<8x1xf32>
    %228 = vector.broadcast %227 : vector<8x1xf32> to vector<8x256xf32>
    %229 = arith.addf %224, %228 : vector<8x256xf32>
    %cst_97 = arith.constant 5.000000e-01 : f32
    %230 = vector.broadcast %cst_97 : f32 to vector<8x256xf32>
    %231 = arith.mulf %230, %229 : vector<8x256xf32>
    %cst_98 = arith.constant 0.707106769 : f32
    %232 = vector.broadcast %cst_98 : f32 to vector<8x256xf32>
    %233 = arith.mulf %229, %232 : vector<8x256xf32>
    %234 = math.erf %233 : vector<8x256xf32>
    %cst_99 = arith.constant 1.000000e+00 : f32
    %235 = vector.broadcast %cst_99 : f32 to vector<8x256xf32>
    %236 = arith.addf %235, %234 : vector<8x256xf32>
    %237 = arith.mulf %231, %236 : vector<8x256xf32>
    %c0_100 = arith.constant 0 : index
    %c0_101 = arith.constant 0 : index
    %238 = vector.load %arg4[%c0_100, %c0_101] : memref<16x8xf32, #tpu.memory_space<vmem>>, vector<16x8xf32>
    %cst_102 = arith.constant dense<0.000000e+00> : vector<16x256xf32>
    %239 = tpu.matmul %238, %237, %cst_102 {dimension_numbers = #tpu.dot_dimension_numbers<[1], [0], [0], [1], [0, 0, 1, 1], [], []>} : vector<16x8xf32>, vector<8x256xf32>, vector<16x256xf32> -> vector<16x256xf32>
    %c0_103 = arith.constant 0 : index
    %c0_104 = arith.constant 0 : index
    %240 = vector.load %arg5[%c0_103, %c0_104] : memref<16x1xf32, #tpu.memory_space<vmem>>, vector<16x1xf32>
    %241 = vector.broadcast %240 : vector<16x1xf32> to vector<16x256xf32>
    %242 = arith.addf %239, %241 : vector<16x256xf32>
    %cst_105 = arith.constant 5.000000e-01 : f32
    %243 = vector.broadcast %cst_105 : f32 to vector<16x256xf32>
    %244 = arith.mulf %243, %242 : vector<16x256xf32>
    %cst_106 = arith.constant 0.707106769 : f32
    %245 = vector.broadcast %cst_106 : f32 to vector<16x256xf32>
    %246 = arith.mulf %242, %245 : vector<16x256xf32>
    %247 = math.erf %246 : vector<16x256xf32>
    %cst_107 = arith.constant 1.000000e+00 : f32
    %248 = vector.broadcast %cst_107 : f32 to vector<16x256xf32>
    %249 = arith.addf %248, %247 : vector<16x256xf32>
    %250 = arith.mulf %244, %249 : vector<16x256xf32>
    %c0_108 = arith.constant 0 : index
    %c0_109 = arith.constant 0 : index
    %251 = vector.load %arg6[%c0_108, %c0_109] : memref<8x16xf32, #tpu.memory_space<vmem>>, vector<8x16xf32>
    %cst_110 = arith.constant dense<0.000000e+00> : vector<8x256xf32>
    %252 = tpu.matmul %251, %250, %cst_110 {dimension_numbers = #tpu.dot_dimension_numbers<[1], [0], [0], [1], [0, 0, 1, 1], [], []>} : vector<8x16xf32>, vector<16x256xf32>, vector<8x256xf32> -> vector<8x256xf32>
    %253 = arith.addf %252, %225 : vector<8x256xf32>
    %c0_111 = arith.constant 0 : index
    %c0_112 = arith.constant 0 : index
    %254 = vector.load %arg7[%c0_111, %c0_112] : memref<8x1xf32, #tpu.memory_space<vmem>>, vector<8x1xf32>
    %255 = vector.broadcast %254 : vector<8x1xf32> to vector<8x256xf32>
    %256 = arith.addf %253, %255 : vector<8x256xf32>
    %c0_113 = arith.constant 0 : index
    %c0_114 = arith.constant 0 : index
    %c0_115 = arith.constant 0 : index
    %257 = vector.load %arg8[%c0_113, %c0_114, %c0_115] : memref<1x8x256xf32, #tpu.memory_space<vmem>>, vector<1x8x256xf32>
    %258 = vector.shape_cast %257 : vector<1x8x256xf32> to vector<8x256xf32>
    %259 = vector.shape_cast %256 : vector<8x256xf32> to vector<1x8x256xf32>
    tpu.vector_store %arg8[%c0_113, %c0_114, %c0_115], %259 {strides = array<i32>} : memref<1x8x256xf32, #tpu.memory_space<vmem>>, vector<1x8x256xf32>,
    return
  }
  func.func @transform_0(%arg0: i32) -> (i32, i32, i32) {
    %c0_i32 = arith.constant 0 : i32
    %c0_i32_0 = arith.constant 0 : i32
    %c0_i32_1 = arith.constant 0 : i32
    return %arg0, %c0_i32, %c0_i32_0 : i32, i32, i32
  }
  func.func @transform_1(%arg0: i32) -> (i32, i32, i32) {
    %c0_i32 = arith.constant 0 : i32
    %c0_i32_0 = arith.constant 0 : i32
    %c0_i32_1 = arith.constant 0 : i32
    return %arg0, %c0_i32, %c0_i32_0 : i32, i32, i32
  }
  func.func @transform_2(%arg0: i32) -> (i32, i32) {
    %c0_i32 = arith.constant 0 : i32
    %c0_i32_0 = arith.constant 0 : i32
    %c0_i32_1 = arith.constant 0 : i32
    return %c0_i32, %c0_i32_0 : i32, i32
  }
  func.func @transform_3(%arg0: i32) -> (i32, i32) {
    %c0_i32 = arith.constant 0 : i32
    %c0_i32_0 = arith.constant 0 : i32
    %c0_i32_1 = arith.constant 0 : i32
    return %c0_i32, %c0_i32_0 : i32, i32
  }
  func.func @transform_4(%arg0: i32) -> (i32, i32) {
    %c0_i32 = arith.constant 0 : i32
    %c0_i32_0 = arith.constant 0 : i32
    %c0_i32_1 = arith.constant 0 : i32
    return %c0_i32, %c0_i32_0 : i32, i32
  }
  func.func @transform_5(%arg0: i32) -> (i32, i32) {
    %c0_i32 = arith.constant 0 : i32
    %c0_i32_0 = arith.constant 0 : i32
    %c0_i32_1 = arith.constant 0 : i32
    return %c0_i32, %c0_i32_0 : i32, i32
  }
  func.func @transform_6(%arg0: i32) -> (i32, i32) {
    %c0_i32 = arith.constant 0 : i32
    %c0_i32_0 = arith.constant 0 : i32
    %c0_i32_1 = arith.constant 0 : i32
    return %c0_i32, %c0_i32_0 : i32, i32
  }
  func.func @transform_7(%arg0: i32) -> (i32, i32, i32) {
    %c0_i32 = arith.constant 0 : i32
    %c0_i32_0 = arith.constant 0 : i32
    %c0_i32_1 = arith.constant 0 : i32
    return %arg0, %c0_i32, %c0_i32_0 : i32, i32, i32
  }
}

</mosaic_0001>

<llo_original>
// kernel: tpu_custom_call.1
$region0: #{tpu_custom_call.1}
  #allocation0 [shape = 'u32[]', space=smem, size = 0x4, offset = 0x4, fixed_abs, tag = 'smem constant byte address 0x4 - core index']
  #allocation1 [shape = 'u32[72,128]{1,0:T(1,128)}', space=vmem, size = 0x9000, scoped, tag = 'internal scratch']
  #allocation2 [shape = 'f32[80,256]{1,0:T(8,128)}', space=vmem, size = 0x14000, scoped, tag = 'scratch operand']
  %s0 = inlined_call_operand.vmem [shape: f32[2,8,256], index: 0, kind: input, shape index: {}]
  %s1 = inlined_call_operand.vmem [shape: f32[2,8,1], index: 1, kind: input, shape index: {}]
  %s2 = inlined_call_operand.vmem [shape: f32[16,80], index: 2, kind: input, shape index: {}]
  %s3 = inlined_call_operand.vmem [shape: f32[16,8], index: 3, kind: input, shape index: {}]
  %s4 = inlined_call_operand.vmem [shape: f32[16,1], index: 4, kind: input, shape index: {}]
  %s5 = inlined_call_operand.vmem [shape: f32[8,16], index: 5, kind: input, shape index: {}]
  %s6 = inlined_call_operand.vmem [shape: f32[8,1], index: 6, kind: input, shape index: {}]
  %s7 = inlined_call_operand.hbm [shape: f32[2,8,256], index: 7, kind: output, shape index: {}]
  %s8 = sld [smem:[#allocation0]]
  $region61: #{tpu_custom_call.1} parent=0
    _
  %s10 = ssub.s32 1, %s8
  %s11 = scalar_select 0, %s10, %s8
  $region1: #{tpu_custom_call.1} parent=0
    #allocation3 [shape = 'u8[16384]{0}', space=vmem, size = 0x4000, scoped, tag = 'output window, operand 0']
    #allocation4 [shape = 's32[2]{0}', space=sflag, size = 0x8, scoped, tag = 'scoped memory for tpu_custom_call.1']
    %12 = vsyncpa [#allocation4], 0
    %s13 = scalar_lea.sflag [#allocation4], 1
    %14 = vsyncpa %s13, 0
    loop: start=0, step=1, limit=4
    $region2: #{tpu_custom_call.1} parent=1 // loop_pre_header
      _
    $region3: #{tpu_custom_call.1} parent=1 // loop_header
      %s16 = sphi 0, %s20
      %p17 = scmp.ge.s32.totalorder %s16, 4
      %s26 = sphi 0, %s28
      %s29 = sphi 0, %s26
      %s30 = sphi 0, %s29
      %s46 = sphi 0, %s30
      %s52 = sphi 0, %s54
      %s55 = sphi 0, %s52
      %s56 = sphi 0, %s55
      %s72 = sphi 0, %s56
      %s76 = sphi 0, %s76
      %s78 = sphi 0, %s76
      %s79 = sphi 0, %s78
      %s93 = sphi 0, %s79
      %s97 = sphi 0, %s97
      %s99 = sphi 0, %s97
      %s100 = sphi 0, %s99
      %s114 = sphi 0, %s100
      %s118 = sphi 0, %s118
      %s120 = sphi 0, %s118
      %s121 = sphi 0, %s120
      %s135 = sphi 0, %s121
      %s139 = sphi 0, %s139
      %s141 = sphi 0, %s139
      %s142 = sphi 0, %s141
      %s156 = sphi 0, %s142
      %s160 = sphi 0, %s160
      %s162 = sphi 0, %s160
      %s163 = sphi 0, %s162
      %s177 = sphi 0, %s163
      %s183 = sphi 0, %s185
      %s186 = sphi 0, %s183
      %s187 = sphi 0, %s186
      %s203 = sphi 0, %s187
    $region4: #{tpu_custom_call.1} parent=1 // loop_header_branch
      %19 = sbr.rel (%p17) target = $region8
    $region5: #{tpu_custom_call.1} parent=1 // loop_body
      %s21 = ssub.s32 %s16, 1
      %s22 = ssub.s32 %s16, 2
      %s23 = sadd.s32 %s16, 1
      %s24 = ssub.s32 %s16, %s23
      %p25 = scmp.eq.s32.totalorder %s24, 0
      %s27 = sadd.s32 %s26, 1
      %s28 = scalar_select %p25, %s26, %s27
      %p31 = pneg %p25
      %p32 = scmp.eq.s32.totalorder %s16, 1
      %p33 = por %p31, %p32
      %p34 = scmp.ne.s32.totalorder %s26, %s29
      %p35 = scmp.eq.s32.totalorder %s16, 0
      %p36 = por %p34, %p35
      %p37 = scmp.ne.s32.totalorder %s26, %s29
      %p38 = scmp.eq.s32.totalorder %s21, 1
      %p39 = por %p37, %p38
      %p40 = scmp.ne.s32.totalorder %s29, %s30
      %p41 = scmp.eq.s32.totalorder %s21, 0
      %p42 = por %p40, %p41
      %p43 = scmp.ne.s32.totalorder %s29, %s30
      %p44 = scmp.eq.s32.totalorder %s22, 1
      %p45 = por %p43, %p44
      %p47 = scmp.ne.s32.totalorder %s30, %s46
      %p48 = scmp.eq.s32.totalorder %s22, 0
      %p49 = por %p47, %p48
      %s50 = ssub.s32 %s16, %s23
      %p51 = scmp.eq.s32.totalorder %s50, 0
      %s53 = sadd.s32 %s52, 1
      %s54 = scalar_select %p51, %s52, %s53
      %p57 = pneg %p51
      %p58 = scmp.eq.s32.totalorder %s16, 1
      %p59 = por %p57, %p58
      %p60 = scmp.ne.s32.totalorder %s52, %s55
      %p61 = scmp.eq.s32.totalorder %s16, 0
      %p62 = por %p60, %p61
      %p63 = scmp.ne.s32.totalorder %s52, %s55
      %p64 = scmp.eq.s32.totalorder %s21, 1
      %p65 = por %p63, %p64
      %p66 = scmp.ne.s32.totalorder %s55, %s56
      %p67 = scmp.eq.s32.totalorder %s21, 0
      %p68 = por %p66, %p67
      %p69 = scmp.ne.s32.totalorder %s55, %s56
      %p70 = scmp.eq.s32.totalorder %s22, 1
      %p71 = por %p69, %p70
      %p73 = scmp.ne.s32.totalorder %s56, %s72
      %p74 = scmp.eq.s32.totalorder %s22, 0
      %p75 = por %p73, %p74
      %s77 = sadd.s32 %s76, 1
      %p80 = scmp.eq.s32.totalorder %s16, 1
      %p81 = scmp.ne.s32.totalorder %s76, %s78
      %p82 = scmp.eq.s32.totalorder %s16, 0
      %p83 = por %p81, %p82
      %p84 = scmp.ne.s32.totalorder %s76, %s78
      %p85 = scmp.eq.s32.totalorder %s21, 1
      %p86 = por %p84, %p85
      %p87 = scmp.ne.s32.totalorder %s78, %s79
      %p88 = scmp.eq.s32.totalorder %s21, 0
      %p89 = por %p87, %p88
      %p90 = scmp.ne.s32.totalorder %s78, %s79
      %p91 = scmp.eq.s32.totalorder %s22, 1
      %p92 = por %p90, %p91
      %p94 = scmp.ne.s32.totalorder %s79, %s93
      %p95 = scmp.eq.s32.totalorder %s22, 0
      %p96 = por %p94, %p95
      %s98 = sadd.s32 %s97, 1
      %p101 = scmp.eq.s32.totalorder %s16, 1
      %p102 = scmp.ne.s32.totalorder %s97, %s99
      %p103 = scmp.eq.s32.totalorder %s16, 0
      %p104 = por %p102, %p103
      %p105 = scmp.ne.s32.totalorder %s97, %s99
      %p106 = scmp.eq.s32.totalorder %s21, 1
      %p107 = por %p105, %p106
      %p108 = scmp.ne.s32.totalorder %s99, %s100
      %p109 = scmp.eq.s32.totalorder %s21, 0
      %p110 = por %p108, %p109
      %p111 = scmp.ne.s32.totalorder %s99, %s100
      %p112 = scmp.eq.s32.totalorder %s22, 1
      %p113 = por %p111, %p112
      %p115 = scmp.ne.s32.totalorder %s100, %s114
      %p116 = scmp.eq.s32.totalorder %s22, 0
      %p117 = por %p115, %p116
      %s119 = sadd.s32 %s118, 1
      %p122 = scmp.eq.s32.totalorder %s16, 1
      %p123 = scmp.ne.s32.totalorder %s118, %s120
      %p124 = scmp.eq.s32.totalorder %s16, 0
      %p125 = por %p123, %p124
      %p126 = scmp.ne.s32.totalorder %s118, %s120
      %p127 = scmp.eq.s32.totalorder %s21, 1
      %p128 = por %p126, %p127
      %p129 = scmp.ne.s32.totalorder %s120, %s121
      %p130 = scmp.eq.s32.totalorder %s21, 0
      %p131 = por %p129, %p130
      %p132 = scmp.ne.s32.totalorder %s120, %s121
      %p133 = scmp.eq.s32.totalorder %s22, 1
      %p134 = por %p132, %p133
      %p136 = scmp.ne.s32.totalorder %s121, %s135
      %p137 = scmp.eq.s32.totalorder %s22, 0
      %p138 = por %p136, %p137
      %s140 = sadd.s32 %s139, 1
      %p143 = scmp.eq.s32.totalorder %s16, 1
      %p144 = scmp.ne.s32.totalorder %s139, %s141
      %p145 = scmp.eq.s32.totalorder %s16, 0
      %p146 = por %p144, %p145
      %p147 = scmp.ne.s32.totalorder %s139, %s141
      %p148 = scmp.eq.s32.totalorder %s21, 1
      %p149 = por %p147, %p148
      %p150 = scmp.ne.s32.totalorder %s141, %s142
      %p151 = scmp.eq.s32.totalorder %s21, 0
      %p152 = por %p150, %p151
      %p153 = scmp.ne.s32.totalorder %s141, %s142
      %p154 = scmp.eq.s32.totalorder %s22, 1
      %p155 = por %p153, %p154
      %p157 = scmp.ne.s32.totalorder %s142, %s156
      %p158 = scmp.eq.s32.totalorder %s22, 0
      %p159 = por %p157, %p158
      %s161 = sadd.s32 %s160, 1
      %p164 = scmp.eq.s32.totalorder %s16, 1
      %p165 = scmp.ne.s32.totalorder %s160, %s162
      %p166 = scmp.eq.s32.totalorder %s16, 0
      %p167 = por %p165, %p166
      %p168 = scmp.ne.s32.totalorder %s160, %s162
      %p169 = scmp.eq.s32.totalorder %s21, 1
      %p170 = por %p168, %p169
      %p171 = scmp.ne.s32.totalorder %s162, %s163
      %p172 = scmp.eq.s32.totalorder %s21, 0
      %p173 = por %p171, %p172
      %p174 = scmp.ne.s32.totalorder %s162, %s163
      %p175 = scmp.eq.s32.totalorder %s22, 1
      %p176 = por %p174, %p175
      %p178 = scmp.ne.s32.totalorder %s163, %s177
      %p179 = scmp.eq.s32.totalorder %s22, 0
      %p180 = por %p178, %p179
      %s181 = ssub.s32 %s16, %s23
      %p182 = scmp.eq.s32.totalorder %s181, 0
      %s184 = sadd.s32 %s183, 1
      %s185 = scalar_select %p182, %s183, %s184
      %p188 = pneg %p182
      %p189 = scmp.eq.s32.totalorder %s16, 1
      %p190 = por %p188, %p189
      %p191 = scmp.ne.s32.totalorder %s183, %s186
      %p192 = scmp.eq.s32.totalorder %s16, 0
      %p193 = por %p191, %p192
      %p194 = scmp.ne.s32.totalorder %s183, %s186
      %p195 = scmp.eq.s32.totalorder %s21, 1
      %p196 = por %p194, %p195
      %p197 = scmp.ne.s32.totalorder %s186, %s187
      %p198 = scmp.eq.s32.totalorder %s21, 0
      %p199 = por %p197, %p198
      %p200 = scmp.ne.s32.totalorder %s186, %s187
      %p201 = scmp.eq.s32.totalorder %s22, 1
      %p202 = por %p200, %p201
      %p204 = scmp.ne.s32.totalorder %s187, %s203
      %p205 = scmp.eq.s32.totalorder %s22, 0
      %p206 = por %p204, %p205
      %p207 = scmp.le.s32.totalorder 1, %s16
      %p208 = scmp.lt.s32.totalorder %s16, 3
      %p209 = pnand %p207, %p208
      %p210 = pneg %p209
      // Predicated region
      $region9: #{tpu_custom_call.1} parent=5 // pred_check
        _
      $region10: #{tpu_custom_call.1} parent=5 // pred_check_branch
        %212 = sbr.rel (%p209) target = $region12
      $region11: #{tpu_custom_call.1} parent=5 // pred_region
        %s213 = ssub.s32 %s16, 1
        // Predicated region
        $region13: #{tpu_custom_call.1} parent=11 // pred_check
          %p214 = pneg %p89
        $region14: #{tpu_custom_call.1} parent=11 // pred_check_branch
          %216 = sbr.rel (%p214) target = $region16
        $region15: #{tpu_custom_call.1} parent=11 // pred_region
          _
        $region16: #{tpu_custom_call.1} parent=11 // pred_fallthru
          _
        // Predicated region
        $region17: #{tpu_custom_call.1} parent=11 // pred_check
          %p217 = pneg %p110
        $region18: #{tpu_custom_call.1} parent=11 // pred_check_branch
          %219 = sbr.rel (%p217) target = $region20
        $region19: #{tpu_custom_call.1} parent=11 // pred_region
          _
        $region20: #{tpu_custom_call.1} parent=11 // pred_fallthru
          _
        // Predicated region
        $region21: #{tpu_custom_call.1} parent=11 // pred_check
          %p220 = pneg %p131
        $region22: #{tpu_custom_call.1} parent=11 // pred_check_branch
          %222 = sbr.rel (%p220) target = $region24
        $region23: #{tpu_custom_call.1} parent=11 // pred_region
          _
        $region24: #{tpu_custom_call.1} parent=11 // pred_fallthru
          _
        // Predicated region
        $region25: #{tpu_custom_call.1} parent=11 // pred_check
          %p223 = pneg %p152
        $region26: #{tpu_custom_call.1} parent=11 // pred_check_branch
          %225 = sbr.rel (%p223) target = $region28
        $region27: #{tpu_custom_call.1} parent=11 // pred_region
          _
        $region28: #{tpu_custom_call.1} parent=11 // pred_fallthru
          _
        // Predicated region
        $region29: #{tpu_custom_call.1} parent=11 // pred_check
          %p226 = pneg %p173
        $region30: #{tpu_custom_call.1} parent=11 // pred_check_branch
          %228 = sbr.rel (%p226) target = $region32
        $region31: #{tpu_custom_call.1} parent=11 // pred_region
          _
        $region32: #{tpu_custom_call.1} parent=11 // pred_fallthru
          _
      $region12: #{tpu_custom_call.1} parent=5 // pred_fallthru
        _
      %p229 = scmp.lt.s32.totalorder %s16, 2
      // Predicated region
      $region33: #{tpu_custom_call.1} parent=5 // pred_check
        %p230 = pneg %p229
      $region34: #{tpu_custom_call.1} parent=5 // pred_check_branch
        %232 = sbr.rel (%p230) target = $region36
      $region35: #{tpu_custom_call.1} parent=5 // pred_region
        // Predicated region
        $region37: #{tpu_custom_call.1} parent=35 // pred_check
          %p233 = pneg %p36
        $region38: #{tpu_custom_call.1} parent=35 // pred_check_branch
          %235 = sbr.rel (%p233) target = $region40
        $region39: #{tpu_custom_call.1} parent=35 // pred_region
          %p236 = scmp.lt.s32.totalorder %s16, 1
          %s237 = scalar_select %p236, %s16, 1
          %s238 = smul.addr %s237, 2
          %s239 = smul.addr %s238, 8
          %s240 = scalar_lea.vmem %s0, %s239
        $region40: #{tpu_custom_call.1} parent=35 // pred_fallthru
          _
        // Predicated region
        $region41: #{tpu_custom_call.1} parent=35 // pred_check
          %p241 = pneg %p62
        $region42: #{tpu_custom_call.1} parent=35 // pred_check_branch
          %243 = sbr.rel (%p241) target = $region44
        $region43: #{tpu_custom_call.1} parent=35 // pred_region
          %p244 = scmp.lt.s32.totalorder %s16, 1
          %s245 = scalar_select %p244, %s16, 1
          %s246 = smul.addr %s245, 8
          %s247 = scalar_lea.vmem %s1, %s246
        $region44: #{tpu_custom_call.1} parent=35 // pred_fallthru
          _
      $region36: #{tpu_custom_call.1} parent=5 // pred_fallthru
        _
      %p248 = scmp.le.s32.totalorder 1, %s16
      %p249 = scmp.lt.s32.totalorder %s16, 3
      %p250 = pnand %p248, %p249
      %p251 = pneg %p250
      // Predicated region
      $region45: #{tpu_custom_call.1} parent=5 // pred_check
        _
      $region46: #{tpu_custom_call.1} parent=5 // pred_check_branch
        %253 = sbr.rel (%p250) target = $region48
      $region47: #{tpu_custom_call.1} parent=5 // pred_region
        %s254 = ssub.s32 %s16, 1
        %p255 = scmp.lt.s32.totalorder %s21, 1
        %s256 = scalar_select %p255, %s21, 1
        %s257 = smul.addr %s256, 2
        %s258 = smul.addr %s257, 8
        %s259 = scalar_lea.vmem %s0, %s258
        %p260 = pneg %p42
        %p261 = pneg %p39
        %p262 = scmp.lt.s32.totalorder %s21, 1
        %s263 = scalar_select %p262, %s21, 1
        %s264 = smul.addr %s263, 8
        %s265 = scalar_lea.vmem %s1, %s264
        %p266 = pneg %p68
        %p267 = pneg %p65
        %p268 = pneg %p89
        %p269 = pneg %p86
        %p270 = pneg %p110
        %p271 = pneg %p107
        %p272 = pneg %p131
        %p273 = pneg %p128
        %p274 = pneg %p152
        %p275 = pneg %p149
        %p276 = pneg %p173
        %p277 = pneg %p170
        %p278 = pneg %p199
        %p279 = pneg %p196
        %s280 = sand.u32 %s186, 1
        %s281 = scalar_lea.sflag [#allocation4], %s280
        %s282 = sand.u32 %s186, 1
        %s283 = smul.addr %s282, 16
        %s284 = scalar_lea.vmem [#allocation3], %s283
        %p285 = scmp.lt.s32.totalorder %s21, 1
        %s286 = scalar_select %p285, %s21, 1
        %s287 = smul.addr %s286, 2
        %s288 = smul.addr %s287, 8
        %s289 = scalar_lea.vmem %s0, %s288
        %p290 = scmp.lt.s32.totalorder %s21, 1
        %s291 = scalar_select %p290, %s21, 1
        %s292 = smul.addr %s291, 8
        %s293 = scalar_lea.vmem %s1, %s292
        %v294 = vlaneseq
        %v295 = vand.u32 %v294, 127
        %v296 = vadd.s32 %v295, 128
        %vm297 = vcmp.lt.s32.totalorder %v295, 0
        %v298 = vsub.s32 0, %v295
        %v299 = vsel %vm297, %v298, %v295
        %v300 = vshrl.u32 %v299, 4
        %v301 = vand.u32 %v299, 15
        %v302 = vsub.s32 0, %v301
        %v303 = vsel %vm297, %v302, %v301
        %vm304 = vcmp.lt.s32.totalorder %v296, 0
        %v305 = vsub.s32 0, %v296
        %v306 = vsel %vm304, %v305, %v296
        %v307 = vshrl.u32 %v306, 4
        %v308 = vand.u32 %v306, 15
        %v309 = vsub.s32 0, %v308
        %v310 = vsel %vm304, %v309, %v308
        %vm311 = vcmp.ne.s32.totalorder %v303, 0
        %vm312 = vcmp.ne.s32.totalorder %v310, 0
        %vm313 = vcmp.lt.s32.totalorder %v303, 0
        %vm314 = vcmp.lt.s32.totalorder %v310, 0
        %vm315 = vmand %vm313, %vm311
        %vm316 = vmand %vm314, %vm312
        %v317 = vadd.s32 %v303, 16
        %v318 = vadd.s32 %v310, 16
        %v319 = vsel %vm315, %v317, %v303
        %v320 = vsel %vm316, %v318, %v310
        %v321 = vadd.s32 %v295, 4294967264
        %v322 = vadd.s32 %v296, 4294967264
        %vm323 = vcmp.ge.s32.totalorder %v321, 0
        %vm324 = vcmp.ge.s32.totalorder %v322, 0
        %vm325 = vcmp.lt.s32.totalorder %v321, 256
        %vm326 = vcmp.lt.s32.totalorder %v322, 256
        %vm327 = vmand %vm323, %vm325
        %vm328 = vmand %vm324, %vm326
        %v329 = vadd.s32 %v319, 4294967294
        %v330 = vadd.s32 %v320, 4294967294
        %vm331 = vcmp.ge.s32.totalorder %v329, 0
        %vm332 = vcmp.ge.s32.totalorder %v330, 0
        %vm333 = vcmp.lt.s32.totalorder %v329, 16
        %vm334 = vcmp.lt.s32.totalorder %v330, 16
        %vm335 = vmand %vm331, %vm333
        %vm336 = vmand %vm332, %vm334
        %vm337 = vmand %vm327, %vm335
        %vm338 = vmand %vm328, %vm336
        %vm339 = vcmp.ge.s32.totalorder %v319, 0
        %vm340 = vcmp.ge.s32.totalorder %v320, 0
        %vm341 = vcmp.lt.s32.totalorder %v319, 16
        %vm342 = vcmp.lt.s32.totalorder %v320, 16
        %vm343 = vmand %vm339, %vm341
        %vm344 = vmand %vm340, %vm342
        %vm345 = vmand %vm327, %vm343
        %vm346 = vmand %vm328, %vm344
        %v347 = vadd.s32 %v319, 2
        %v348 = vadd.s32 %v320, 2
        %vm349 = vcmp.ge.s32.totalorder %v347, 0
        %vm350 = vcmp.ge.s32.totalorder %v348, 0
        %vm351 = vcmp.lt.s32.totalorder %v347, 16
        %vm352 = vcmp.lt.s32.totalorder %v348, 16
        %vm353 = vmand %vm349, %vm351
        %vm354 = vmand %vm350, %vm352
        %vm355 = vmand %vm327, %vm353
        %vm356 = vmand %vm328, %vm354
        %vm357 = vcmp.ge.s32.totalorder %v295, 0
        %vm358 = vcmp.ge.s32.totalorder %v296, 0
        %vm359 = vcmp.lt.s32.totalorder %v295, 256
        %vm360 = vcmp.lt.s32.totalorder %v296, 256
        %vm361 = vmand %vm357, %vm359
        %vm362 = vmand %vm358, %vm360
        %vm363 = vmand %vm361, %vm335
        %vm364 = vmand %vm362, %vm336
        %vm365 = vmand %vm361, %vm353
        %vm366 = vmand %vm362, %vm354
        %v367 = vadd.s32 %v295, 32
        %v368 = vadd.s32 %v296, 32
        %vm369 = vcmp.ge.s32.totalorder %v367, 0
        %vm370 = vcmp.ge.s32.totalorder %v368, 0
        %vm371 = vcmp.lt.s32.totalorder %v367, 256
        %vm372 = vcmp.lt.s32.totalorder %v368, 256
        %vm373 = vmand %vm369, %vm371
        %vm374 = vmand %vm370, %vm372
        %vm375 = vmand %vm373, %vm335
        %vm376 = vmand %vm374, %vm336
        %vm377 = vmand %vm373, %vm343
        %vm378 = vmand %vm374, %vm344
        %vm379 = vmand %vm373, %vm353
        %vm380 = vmand %vm374, %vm354
        %v381 = vld [vmem:[%s289] sm:$0xff]
        %v382 = vld [vmem:[%s289 + $0x8] sm:$0xff]
        %v383 = vadd.f32 %v381, %v382
        %384 = vadd.xlane.f32.xlu0 %v383
        %v385 = vpop.xlane.xlu0 %384
        %v386 = vmul.f32 %v385, 0.00390625
        %v387 = vsub.f32 %v381, %v386
        %v388 = vsub.f32 %v382, %v386
        %v389 = vmul.f32 %v387, %v387
        %v390 = vmul.f32 %v388, %v388
        %v391 = vadd.f32 %v389, %v390
        %392 = vadd.xlane.f32.xlu0 %v391
        %v393 = vpop.xlane.xlu0 %392
        %v394 = vmul.f32 %v393, 0.00390625
        %v395 = vadd.f32 %v394, 1e-05
        %v396 = vrsqrt.pop %v395
        %v397 = vmul.f32 %v396, %v395
        %v398 = vmul.f32 %v397, %v396
        %v399 = vmul.f32 0.5, %v398
        %v400 = vsub.f32 1.5, %v399
        %v401 = vmul.f32 %v396, %v400
        %vm402 = vweird.f32 %v395
        %vm403 = vweird.f32 %v396
        %vm404 = vmor %vm402, %vm403
        %v405 = vsel %vm404, %v396, %v401
        %v406 = vmul.f32 %v387, %v405
        %v407 = vmul.f32 %v388, %v405
        %408 = vrot.lane.b32.xlu0 %v406, 34
        %v409 = vpop.permute.xlu0 %408
        %410 = vrot.lane.b32.xlu0 %v407, 34
        %v411 = vpop.permute.xlu0 %410
        %vm412 = vcmp.lt.s32.totalorder %v295, 34
        %v413 = vsel %vm412, %v409, %v411
        %v414 = vsel %vm412, %v411, %v409
        %v415 = vsel %vm337, %v414, 0.0
        %v416 = vsel %vm338, %v413, 0.0
        %417 = vst [vmem:[#allocation2] sm:$0xff] %v415
        %418 = vst [vmem:[#allocation2 + $0x8] sm:$0xff] %v416
        %419 = vrot.lane.b32.xlu0 %v406, 32
        %v420 = vpop.permute.xlu0 %419
        %421 = vrot.lane.b32.xlu0 %v407, 32
        %v422 = vpop.permute.xlu0 %421
        %vm423 = vcmp.lt.s32.totalorder %v295, 32
        %v424 = vsel %vm423, %v420, %v422
        %v425 = vsel %vm423, %v422, %v420
        %v426 = vsel %vm345, %v425, 0.0
        %v427 = vsel %vm346, %v424, 0.0
        %428 = vst [vmem:[#allocation2 + $0x10] sm:$0xff] %v426
        %429 = vst [vmem:[#allocation2 + $0x18] sm:$0xff] %v427
        %430 = vrot.lane.b32.xlu0 %v406, 30
        %v431 = vpop.permute.xlu0 %430
        %432 = vrot.lane.b32.xlu0 %v407, 30
        %v433 = vpop.permute.xlu0 %432
        %vm434 = vcmp.lt.s32.totalorder %v295, 30
        %v435 = vsel %vm434, %v431, %v433
        %v436 = vsel %vm434, %v433, %v431
        %v437 = vsel %vm355, %v436, 0.0
        %v438 = vsel %vm356, %v435, 0.0
        %439 = vst [vmem:[#allocation2 + $0x20] sm:$0xff] %v437
        %440 = vst [vmem:[#allocation2 + $0x28] sm:$0xff] %v438
        %441 = vrot.lane.b32.xlu0 %v406, 2
        %v442 = vpop.permute.xlu0 %441
        %443 = vrot.lane.b32.xlu0 %v407, 2
        %v444 = vpop.permute.xlu0 %443
        %vm445 = vcmp.lt.s32.totalorder %v295, 2
        %v446 = vsel %vm445, %v442, %v444
        %v447 = vsel %vm445, %v444, %v442
        %v448 = vsel %vm363, %v447, 0.0
        %v449 = vsel %vm364, %v446, 0.0
        %450 = vst [vmem:[#allocation2 + $0x30] sm:$0xff] %v448
        %451 = vst [vmem:[#allocation2 + $0x38] sm:$0xff] %v449
        %452 = vst [vmem:[#allocation2 + $0x40] sm:$0xff] %v406
        %453 = vst [vmem:[#allocation2 + $0x48] sm:$0xff] %v407
        %454 = vrot.lane.b32.xlu0 %v406, 126
        %v455 = vpop.permute.xlu0 %454
        %456 = vrot.lane.b32.xlu0 %v407, 126
        %v457 = vpop.permute.xlu0 %456
        %vm458 = vcmp.lt.s32.totalorder %v295, 126
        %v459 = vsel %vm458, %v455, %v457
        %v460 = vsel %vm458, %v457, %v455
        %v461 = vsel %vm365, %v459, 0.0
        %v462 = vsel %vm366, %v460, 0.0
        %463 = vst [vmem:[#allocation2 + $0x50] sm:$0xff] %v461
        %464 = vst [vmem:[#allocation2 + $0x58] sm:$0xff] %v462
        %465 = vrot.lane.b32.xlu0 %v406, 98
        %v466 = vpop.permute.xlu0 %465
        %467 = vrot.lane.b32.xlu0 %v407, 98
        %v468 = vpop.permute.xlu0 %467
        %vm469 = vcmp.lt.s32.totalorder %v295, 98
        %v470 = vsel %vm469, %v466, %v468
        %v471 = vsel %vm469, %v468, %v466
        %v472 = vsel %vm375, %v470, 0.0
        %v473 = vsel %vm376, %v471, 0.0
        %474 = vst [vmem:[#allocation2 + $0x60] sm:$0xff] %v472
        %475 = vst [vmem:[#allocation2 + $0x68] sm:$0xff] %v473
        %476 = vrot.lane.b32.xlu0 %v406, 96
        %v477 = vpop.permute.xlu0 %476
        %478 = vrot.lane.b32.xlu0 %v407, 96
        %v479 = vpop.permute.xlu0 %478
        %vm480 = vcmp.lt.s32.totalorder %v295, 96
        %v481 = vsel %vm480, %v477, %v479
        %v482 = vsel %vm480, %v479, %v477
        %v483 = vsel %vm377, %v481, 0.0
        %v484 = vsel %vm378, %v482, 0.0
        %485 = vst [vmem:[#allocation2 + $0x70] sm:$0xff] %v483
        %486 = vst [vmem:[#allocation2 + $0x78] sm:$0xff] %v484
        %487 = vrot.lane.b32.xlu0 %v406, 94
        %v488 = vpop.permute.xlu0 %487
        %489 = vrot.lane.b32.xlu0 %v407, 94
        %v490 = vpop.permute.xlu0 %489
        %vm491 = vcmp.lt.s32.totalorder %v295, 94
        %v492 = vsel %vm491, %v488, %v490
        %v493 = vsel %vm491, %v490, %v488
        %v494 = vsel %vm379, %v492, 0.0
        %v495 = vsel %vm380, %v493, 0.0
        %496 = vst [vmem:[#allocation2 + $0x80] sm:$0xff] %v494
        %497 = vst [vmem:[#allocation2 + $0x88] sm:$0xff] %v495
        %498 = vst [vmem:[#allocation2 + $0x90] sm:$0xff] %v381
        %499 = vst [vmem:[#allocation2 + $0x98] sm:$0xff] %v382
        %v500 = vld [vmem:[%s2] sm:$0xff]
        %v501 = vld [vmem:[%s2 + $0x8] sm:$0xff]
        %v502 = vld [vmem:[#allocation2] sm:$0xff]
        %v503 = vld [vmem:[#allocation2 + $0x8] sm:$0xff]
        %v504 = vld [vmem:[#allocation2 + $0x10] sm:$0xff]
        %v505 = vld [vmem:[#allocation2 + $0x18] sm:$0xff]
        %v506 = vld [vmem:[#allocation2 + $0x20] sm:$0xff]
        %v507 = vld [vmem:[#allocation2 + $0x28] sm:$0xff]
        %v508 = vld [vmem:[#allocation2 + $0x30] sm:$0xff]
        %v509 = vld [vmem:[#allocation2 + $0x38] sm:$0xff]
        %v510 = vld [vmem:[#allocation2 + $0x40] sm:$0xff]
        %v511 = vld [vmem:[#allocation2 + $0x48] sm:$0xff]
        %v512 = vld [vmem:[#allocation2 + $0x50] sm:$0xff]
        %v513 = vld [vmem:[#allocation2 + $0x58] sm:$0xff]
        %v514 = vld [vmem:[#allocation2 + $0x60] sm:$0xff]
        %v515 = vld [vmem:[#allocation2 + $0x68] sm:$0xff]
        %v516 = vld [vmem:[#allocation2 + $0x70] sm:$0xff]
        %v517 = vld [vmem:[#allocation2 + $0x78] sm:$0xff]
        %v518 = vld [vmem:[#allocation2 + $0x80] sm:$0xff]
        %v519 = vld [vmem:[#allocation2 + $0x88] sm:$0xff]
        %v520 = vld [vmem:[#allocation2 + $0x90] sm:$0xff]
        %v521 = vld [vmem:[#allocation2 + $0x98] sm:$0xff]
        %vm522 = vcmask 654336
        %v524 = vsel %vm522, %v500, 0
        %v527 = vsel %vm522, %v501, 0
        %529 = vmatpush.msra.mxu0 0.0
        %530 = vmatpush.msra.mxu0 0.0
        %531 = vmatpush.msra.mxu0 0.0
        %532 = vmatpush.msra.mxu0 0.0
        %533 = vmatpush.msra.mxu0 0.0
        %534 = vmatpush.msra.mxu0 0.0
        %535 = vmatpush.msra.mxu0 %v520
        %536 = vmatpush.msra.mxu0 %v518
        %537 = vmatpush.msra.mxu0 %v516
        %538 = vmatpush.msra.mxu0 %v514
        %539 = vmatpush.msra.mxu0 %v512
        %540 = vmatpush.msra.mxu0 %v510
        %541 = vmatpush.msra.mxu0 %v508
        %542 = vmatpush.msra.mxu0 %v506
        %543 = vmatpush.msra.mxu0 %v504
        %544 = vmatpush.msra.mxu0 %v502
        %545 = vmatmul.f32.gmra.mxu0 %v524
        %v546 = vpop.f32.mrf.mxu0
        %v547 = vadd.f32 0.0, %v546
        %548 = vmatmul.f32.gmra.mxu0 %v527
        %v549 = vpop.f32.mrf.mxu0
        %v550 = vadd.f32 0.0, %v549
        %551 = vdwg.mxu0
        %552 = vmatpush.msra.mxu0 0.0
        %553 = vmatpush.msra.mxu0 0.0
        %554 = vmatpush.msra.mxu0 0.0
        %555 = vmatpush.msra.mxu0 0.0
        %556 = vmatpush.msra.mxu0 0.0
        %557 = vmatpush.msra.mxu0 0.0
        %558 = vmatpush.msra.mxu0 %v521
        %559 = vmatpush.msra.mxu0 %v519
        %560 = vmatpush.msra.mxu0 %v517
        %561 = vmatpush.msra.mxu0 %v515
        %562 = vmatpush.msra.mxu0 %v513
        %563 = vmatpush.msra.mxu0 %v511
        %564 = vmatpush.msra.mxu0 %v509
        %565 = vmatpush.msra.mxu0 %v507
        %566 = vmatpush.msra.mxu0 %v505
        %567 = vmatpush.msra.mxu0 %v503
        %568 = vmatmul.f32.gmra.mxu0 %v524
        %v569 = vpop.f32.mrf.mxu0
        %v570 = vadd.f32 0.0, %v569
        %571 = vmatmul.f32.gmra.mxu0 %v527
        %v572 = vpop.f32.mrf.mxu0
        %v573 = vadd.f32 0.0, %v572
        %574 = vdwg.mxu0
        %v575 = vld [vmem:[%s293] sm:$0xff]
        %577 = vset.pattern.permute.xlu0 0
        %578 = vperm.xlu0 %577, %v575
        %v579 = vpop.permute.xlu0 %578
        %v581 = vadd.f32 %v547, %v579
        %v582 = vadd.f32 %v570, %v579
        %v583 = vmul.f32 %v581, 0.5
        %v584 = vmul.f32 %v582, 0.5
        %v585 = vmul.f32 %v581, 0.70710677
        %v586 = vmul.f32 %v582, 0.70710677
        %v587 = vmul.f32 %v585, %v585
        %v588 = vmin.f32 16.0, %v587
        %v589 = vmul.f32 %v588, 2.1237322e-06
        %v590 = vadd.f32 %v589, 0.00028619796
        %v591 = vmul.f32 %v588, %v590
        %v592 = vadd.f32 %v591, 0.0036580483
        %v593 = vmul.f32 %v588, %v592
        %v594 = vadd.f32 %v593, 0.05243302
        %v595 = vmul.f32 %v588, %v594
        %v596 = vadd.f32 %v595, 0.18741608
        %v597 = vmul.f32 %v588, %v596
        %v598 = vadd.f32 %v597, 1.1283791
        %v599 = vmul.f32 %v585, %v598
        %v600 = vmul.f32 %v588, 3.8918573e-05
        %v601 = vadd.f32 %v600, 0.001143296
        %v602 = vmul.f32 %v588, %v601
        %v603 = vadd.f32 %v602, 0.014752088
        %v604 = vmul.f32 %v588, %v603
        %v605 = vadd.f32 %v604, 0.112945676
        %v606 = vmul.f32 %v588, %v605
        %v607 = vadd.f32 %v606, 0.4994258
        %v608 = vmul.f32 %v588, %v607
        %v609 = vadd.f32 %v608, 1.0
        %v610 = vrcp.pop %v609
        %v611 = vmul.f32 %v609, %v610
        %v612 = vsub.f32 1.0, %v611
        %v613 = vmul.f32 %v610, %v612
        %v614 = vadd.f32 %v610, %v613
        %vm615 = vweird.f32 %v609
        %vm616 = vweird.f32 %v610
        %vm617 = vmor %vm615, %vm616
        %v618 = vsel %vm617, %v610, %v614
        %v619 = vand.u32 2147483647, %v609
        %vm620 = vcmp.eq.f32.partialorder %v619, 8.507059e+37
        %v621 = vand.u32 %v609, 2147483648
        %v622 = vor.u32 1.1754944e-38, %v621
        %v623 = vsel %vm620, %v622, %v618
        %v624 = vmul.f32 %v599, %v623
        %v625 = vmin.f32 %v624, 1.0
        %v626 = vmax.f32 %v625, -1.0
        %v627 = vmul.f32 %v586, %v586
        %v628 = vmin.f32 16.0, %v627
        %v629 = vmul.f32 %v628, 2.1237322e-06
        %v630 = vadd.f32 %v629, 0.00028619796
        %v631 = vmul.f32 %v628, %v630
        %v632 = vadd.f32 %v631, 0.0036580483
        %v633 = vmul.f32 %v628, %v632
        %v634 = vadd.f32 %v633, 0.05243302
        %v635 = vmul.f32 %v628, %v634
        %v636 = vadd.f32 %v635, 0.18741608
        %v637 = vmul.f32 %v628, %v636
        %v638 = vadd.f32 %v637, 1.1283791
        %v639 = vmul.f32 %v586, %v638
        %v640 = vmul.f32 %v628, 3.8918573e-05
        %v641 = vadd.f32 %v640, 0.001143296
        %v642 = vmul.f32 %v628, %v641
        %v643 = vadd.f32 %v642, 0.014752088
        %v644 = vmul.f32 %v628, %v643
        %v645 = vadd.f32 %v644, 0.112945676
        %v646 = vmul.f32 %v628, %v645
        %v647 = vadd.f32 %v646, 0.4994258
        %v648 = vmul.f32 %v628, %v647
        %v649 = vadd.f32 %v648, 1.0
        %v650 = vrcp.pop %v649
        %v651 = vmul.f32 %v649, %v650
        %v652 = vsub.f32 1.0, %v651
        %v653 = vmul.f32 %v650, %v652
        %v654 = vadd.f32 %v650, %v653
        %vm655 = vweird.f32 %v649
        %vm656 = vweird.f32 %v650
        %vm657 = vmor %vm655, %vm656
        %v658 = vsel %vm657, %v650, %v654
        %v659 = vand.u32 2147483647, %v649
        %vm660 = vcmp.eq.f32.partialorder %v659, 8.507059e+37
        %v661 = vand.u32 %v649, 2147483648
        %v662 = vor.u32 1.1754944e-38, %v661
        %v663 = vsel %vm660, %v662, %v658
        %v664 = vmul.f32 %v639, %v663
        %v665 = vmin.f32 %v664, 1.0
        %v666 = vmax.f32 %v665, -1.0
        %v667 = vadd.f32 %v626, 1.0
        %v668 = vadd.f32 %v666, 1.0
        %v669 = vmul.f32 %v583, %v667
        %v670 = vmul.f32 %v584, %v668
        %v671 = vld [vmem:[%s3] sm:$0xff]
        %v672 = vld [vmem:[%s3 + $0x8] sm:$0xff]
        %v673 = vld [vmem:[%s4] sm:$0xff]
        %v674 = vld [vmem:[%s4 + $0x8] sm:$0xff]
        %676 = vset.pattern.permute.xlu0 0
        %677 = vperm.xlu0 %676, %v673
        %v678 = vpop.permute.xlu0 %677
        %681 = vset.pattern.permute.xlu0 0
        %682 = vperm.xlu0 %681, %v674
        %v683 = vpop.permute.xlu0 %682
        %vm685 = vcmask 64512
        %v687 = vsel %vm685, %v671, 0
        %v690 = vsel %vm685, %v672, 0
        %692 = vmatpush.msra.mxu0 0.0
        %693 = vmatpush.msra.mxu0 0.0
        %694 = vmatpush.msra.mxu0 0.0
        %695 = vmatpush.msra.mxu0 0.0
        %696 = vmatpush.msra.mxu0 0.0
        %697 = vmatpush.msra.mxu0 0.0
        %698 = vmatpush.msra.mxu0 0.0
        %699 = vmatpush.msra.mxu0 0.0
        %700 = vmatpush.msra.mxu0 0.0
        %701 = vmatpush.msra.mxu0 0.0
        %702 = vmatpush.msra.mxu0 0.0
        %703 = vmatpush.msra.mxu0 0.0
        %704 = vmatpush.msra.mxu0 0.0
        %705 = vmatpush.msra.mxu0 0.0
        %706 = vmatpush.msra.mxu0 0.0
        %707 = vmatpush.msra.mxu0 %v669
        %708 = vmatmul.f32.gmra.mxu0 %v687
        %v709 = vpop.f32.mrf.mxu0
        %v710 = vadd.f32 %v678, %v709
        %711 = vmatmul.f32.gmra.mxu0 %v690
        %v712 = vpop.f32.mrf.mxu0
        %v713 = vadd.f32 %v683, %v712
        %714 = vdwg.mxu0
        %715 = vmatpush.msra.mxu0 0.0
        %716 = vmatpush.msra.mxu0 0.0
        %717 = vmatpush.msra.mxu0 0.0
        %718 = vmatpush.msra.mxu0 0.0
        %719 = vmatpush.msra.mxu0 0.0
        %720 = vmatpush.msra.mxu0 0.0
        %721 = vmatpush.msra.mxu0 0.0
        %722 = vmatpush.msra.mxu0 0.0
        %723 = vmatpush.msra.mxu0 0.0
        %724 = vmatpush.msra.mxu0 0.0
        %725 = vmatpush.msra.mxu0 0.0
        %726 = vmatpush.msra.mxu0 0.0
        %727 = vmatpush.msra.mxu0 0.0
        %728 = vmatpush.msra.mxu0 0.0
        %729 = vmatpush.msra.mxu0 0.0
        %730 = vmatpush.msra.mxu0 %v670
        %731 = vmatmul.f32.gmra.mxu0 %v687
        %v732 = vpop.f32.mrf.mxu0
        %v733 = vadd.f32 %v678, %v732
        %734 = vmatmul.f32.gmra.mxu0 %v690
        %v735 = vpop.f32.mrf.mxu0
        %v736 = vadd.f32 %v683, %v735
        %737 = vdwg.mxu0
        %v738 = vmul.f32 %v710, 0.5
        %v739 = vmul.f32 %v733, 0.5
        %v740 = vmul.f32 %v713, 0.5
        %v741 = vmul.f32 %v736, 0.5
        %v742 = vmul.f32 %v710, 0.70710677
        %v743 = vmul.f32 %v733, 0.70710677
        %v744 = vmul.f32 %v713, 0.70710677
        %v745 = vmul.f32 %v736, 0.70710677
        %v746 = vmul.f32 %v742, %v742
        %v747 = vmin.f32 16.0, %v746
        %v748 = vmul.f32 %v747, 2.1237322e-06
        %v749 = vadd.f32 %v748, 0.00028619796
        %v750 = vmul.f32 %v747, %v749
        %v751 = vadd.f32 %v750, 0.0036580483
        %v752 = vmul.f32 %v747, %v751
        %v753 = vadd.f32 %v752, 0.05243302
        %v754 = vmul.f32 %v747, %v753
        %v755 = vadd.f32 %v754, 0.18741608
        %v756 = vmul.f32 %v747, %v755
        %v757 = vadd.f32 %v756, 1.1283791
        %v758 = vmul.f32 %v742, %v757
        %v759 = vmul.f32 %v747, 3.8918573e-05
        %v760 = vadd.f32 %v759, 0.001143296
        %v761 = vmul.f32 %v747, %v760
        %v762 = vadd.f32 %v761, 0.014752088
        %v763 = vmul.f32 %v747, %v762
        %v764 = vadd.f32 %v763, 0.112945676
        %v765 = vmul.f32 %v747, %v764
        %v766 = vadd.f32 %v765, 0.4994258
        %v767 = vmul.f32 %v747, %v766
        %v768 = vadd.f32 %v767, 1.0
        %v769 = vrcp.pop %v768
        %v770 = vmul.f32 %v768, %v769
        %v771 = vsub.f32 1.0, %v770
        %v772 = vmul.f32 %v769, %v771
        %v773 = vadd.f32 %v769, %v772
        %vm774 = vweird.f32 %v768
        %vm775 = vweird.f32 %v769
        %vm776 = vmor %vm774, %vm775
        %v777 = vsel %vm776, %v769, %v773
        %v778 = vand.u32 2147483647, %v768
        %vm779 = vcmp.eq.f32.partialorder %v778, 8.507059e+37
        %v780 = vand.u32 %v768, 2147483648
        %v781 = vor.u32 1.1754944e-38, %v780
        %v782 = vsel %vm779, %v781, %v777
        %v783 = vmul.f32 %v758, %v782
        %v784 = vmin.f32 %v783, 1.0
        %v785 = vmax.f32 %v784, -1.0
        %v786 = vmul.f32 %v743, %v743
        %v787 = vmin.f32 16.0, %v786
        %v788 = vmul.f32 %v787, 2.1237322e-06
        %v789 = vadd.f32 %v788, 0.00028619796
        %v790 = vmul.f32 %v787, %v789
        %v791 = vadd.f32 %v790, 0.0036580483
        %v792 = vmul.f32 %v787, %v791
        %v793 = vadd.f32 %v792, 0.05243302
        %v794 = vmul.f32 %v787, %v793
        %v795 = vadd.f32 %v794, 0.18741608
        %v796 = vmul.f32 %v787, %v795
        %v797 = vadd.f32 %v796, 1.1283791
        %v798 = vmul.f32 %v743, %v797
        %v799 = vmul.f32 %v787, 3.8918573e-05
        %v800 = vadd.f32 %v799, 0.001143296
        %v801 = vmul.f32 %v787, %v800
        %v802 = vadd.f32 %v801, 0.014752088
        %v803 = vmul.f32 %v787, %v802
        %v804 = vadd.f32 %v803, 0.112945676
        %v805 = vmul.f32 %v787, %v804
        %v806 = vadd.f32 %v805, 0.4994258
        %v807 = vmul.f32 %v787, %v806
        %v808 = vadd.f32 %v807, 1.0
        %v809 = vrcp.pop %v808
        %v810 = vmul.f32 %v808, %v809
        %v811 = vsub.f32 1.0, %v810
        %v812 = vmul.f32 %v809, %v811
        %v813 = vadd.f32 %v809, %v812
        %vm814 = vweird.f32 %v808
        %vm815 = vweird.f32 %v809
        %vm816 = vmor %vm814, %vm815
        %v817 = vsel %vm816, %v809, %v813
        %v818 = vand.u32 2147483647, %v808
        %vm819 = vcmp.eq.f32.partialorder %v818, 8.507059e+37
        %v820 = vand.u32 %v808, 2147483648
        %v821 = vor.u32 1.1754944e-38, %v820
        %v822 = vsel %vm819, %v821, %v817
        %v823 = vmul.f32 %v798, %v822
        %v824 = vmin.f32 %v823, 1.0
        %v825 = vmax.f32 %v824, -1.0
        %v826 = vmul.f32 %v744, %v744
        %v827 = vmin.f32 16.0, %v826
        %v828 = vmul.f32 %v827, 2.1237322e-06
        %v829 = vadd.f32 %v828, 0.00028619796
        %v830 = vmul.f32 %v827, %v829
        %v831 = vadd.f32 %v830, 0.0036580483
        %v832 = vmul.f32 %v827, %v831
        %v833 = vadd.f32 %v832, 0.05243302
        %v834 = vmul.f32 %v827, %v833
        %v835 = vadd.f32 %v834, 0.18741608
        %v836 = vmul.f32 %v827, %v835
        %v837 = vadd.f32 %v836, 1.1283791
        %v838 = vmul.f32 %v744, %v837
        %v839 = vmul.f32 %v827, 3.8918573e-05
        %v840 = vadd.f32 %v839, 0.001143296
        %v841 = vmul.f32 %v827, %v840
        %v842 = vadd.f32 %v841, 0.014752088
        %v843 = vmul.f32 %v827, %v842
        %v844 = vadd.f32 %v843, 0.112945676
        %v845 = vmul.f32 %v827, %v844
        %v846 = vadd.f32 %v845, 0.4994258
        %v847 = vmul.f32 %v827, %v846
        %v848 = vadd.f32 %v847, 1.0
        %v849 = vrcp.pop %v848
        %v850 = vmul.f32 %v848, %v849
        %v851 = vsub.f32 1.0, %v850
        %v852 = vmul.f32 %v849, %v851
        %v853 = vadd.f32 %v849, %v852
        %vm854 = vweird.f32 %v848
        %vm855 = vweird.f32 %v849
        %vm856 = vmor %vm854, %vm855
        %v857 = vsel %vm856, %v849, %v853
        %v858 = vand.u32 2147483647, %v848
        %vm859 = vcmp.eq.f32.partialorder %v858, 8.507059e+37
        %v860 = vand.u32 %v848, 2147483648
        %v861 = vor.u32 1.1754944e-38, %v860
        %v862 = vsel %vm859, %v861, %v857
        %v863 = vmul.f32 %v838, %v862
        %v864 = vmin.f32 %v863, 1.0
        %v865 = vmax.f32 %v864, -1.0
        %v866 = vmul.f32 %v745, %v745
        %v867 = vmin.f32 16.0, %v866
        %v868 = vmul.f32 %v867, 2.1237322e-06
        %v869 = vadd.f32 %v868, 0.00028619796
        %v870 = vmul.f32 %v867, %v869
        %v871 = vadd.f32 %v870, 0.0036580483
        %v872 = vmul.f32 %v867, %v871
        %v873 = vadd.f32 %v872, 0.05243302
        %v874 = vmul.f32 %v867, %v873
        %v875 = vadd.f32 %v874, 0.18741608
        %v876 = vmul.f32 %v867, %v875
        %v877 = vadd.f32 %v876, 1.1283791
        %v878 = vmul.f32 %v745, %v877
        %v879 = vmul.f32 %v867, 3.8918573e-05
        %v880 = vadd.f32 %v879, 0.001143296
        %v881 = vmul.f32 %v867, %v880
        %v882 = vadd.f32 %v881, 0.014752088
        %v883 = vmul.f32 %v867, %v882
        %v884 = vadd.f32 %v883, 0.112945676
        %v885 = vmul.f32 %v867, %v884
        %v886 = vadd.f32 %v885, 0.4994258
        %v887 = vmul.f32 %v867, %v886
        %v888 = vadd.f32 %v887, 1.0
        %v889 = vrcp.pop %v888
        %v890 = vmul.f32 %v888, %v889
        %v891 = vsub.f32 1.0, %v890
        %v892 = vmul.f32 %v889, %v891
        %v893 = vadd.f32 %v889, %v892
        %vm894 = vweird.f32 %v888
        %vm895 = vweird.f32 %v889
        %vm896 = vmor %vm894, %vm895
        %v897 = vsel %vm896, %v889, %v893
        %v898 = vand.u32 2147483647, %v888
        %vm899 = vcmp.eq.f32.partialorder %v898, 8.507059e+37
        %v900 = vand.u32 %v888, 2147483648
        %v901 = vor.u32 1.1754944e-38, %v900
        %v902 = vsel %vm899, %v901, %v897
        %v903 = vmul.f32 %v878, %v902
        %v904 = vmin.f32 %v903, 1.0
        %v905 = vmax.f32 %v904, -1.0
        %v906 = vadd.f32 %v785, 1.0
        %v907 = vadd.f32 %v825, 1.0
        %v908 = vadd.f32 %v865, 1.0
        %v909 = vadd.f32 %v905, 1.0
        %v910 = vmul.f32 %v738, %v906
        %v911 = vmul.f32 %v739, %v907
        %v912 = vmul.f32 %v740, %v908
        %v913 = vmul.f32 %v741, %v909
        %v914 = vld [vmem:[%s5] sm:$0xff]
        %vm915 = vcmask 130048
        %v917 = vsel %vm915, %v914, 0
        %919 = vmatpush.msra.mxu0 0.0
        %920 = vmatpush.msra.mxu0 0.0
        %921 = vmatpush.msra.mxu0 0.0
        %922 = vmatpush.msra.mxu0 0.0
        %923 = vmatpush.msra.mxu0 0.0
        %924 = vmatpush.msra.mxu0 0.0
        %925 = vmatpush.msra.mxu0 0.0
        %926 = vmatpush.msra.mxu0 0.0
        %927 = vmatpush.msra.mxu0 0.0
        %928 = vmatpush.msra.mxu0 0.0
        %929 = vmatpush.msra.mxu0 0.0
        %930 = vmatpush.msra.mxu0 0.0
        %931 = vmatpush.msra.mxu0 0.0
        %932 = vmatpush.msra.mxu0 0.0
        %933 = vmatpush.msra.mxu0 %v912
        %934 = vmatpush.msra.mxu0 %v910
        %935 = vmatmul.f32.gmra.mxu0 %v917
        %v936 = vpop.f32.mrf.mxu0
        %v937 = vadd.f32 %v550, %v936
        %938 = vdwg.mxu0
        %939 = vmatpush.msra.mxu0 0.0
        %940 = vmatpush.msra.mxu0 0.0
        %941 = vmatpush.msra.mxu0 0.0
        %942 = vmatpush.msra.mxu0 0.0
        %943 = vmatpush.msra.mxu0 0.0
        %944 = vmatpush.msra.mxu0 0.0
        %945 = vmatpush.msra.mxu0 0.0
        %946 = vmatpush.msra.mxu0 0.0
        %947 = vmatpush.msra.mxu0 0.0
        %948 = vmatpush.msra.mxu0 0.0
        %949 = vmatpush.msra.mxu0 0.0
        %950 = vmatpush.msra.mxu0 0.0
        %951 = vmatpush.msra.mxu0 0.0
        %952 = vmatpush.msra.mxu0 0.0
        %953 = vmatpush.msra.mxu0 %v913
        %954 = vmatpush.msra.mxu0 %v911
        %955 = vmatmul.f32.gmra.mxu0 %v917
        %v956 = vpop.f32.mrf.mxu0
        %v957 = vadd.f32 %v573, %v956
        %958 = vdwg.mxu0
        %v959 = vld [vmem:[%s6] sm:$0xff]
        %961 = vset.pattern.permute.xlu0 0
        %962 = vperm.xlu0 %961, %v959
        %v963 = vpop.permute.xlu0 %962
        %v965 = vadd.f32 %v937, %v963
        %v966 = vadd.f32 %v957, %v963
        %967 = vst [vmem:[%s284] sm:$0xff] %v965
        %968 = vst [vmem:[%s284 + $0x8] sm:$0xff] %v966
        %s969 = sand.u32 %s186, 1
        %s970 = scalar_lea.sflag [#allocation4], %s969
        %s971 = sand.u32 %s186, 1
        %s972 = smul.addr %s971, 16
        %s973 = scalar_lea.vmem [#allocation3], %s972
        // Predicated region
        $region49: #{tpu_custom_call.1} parent=47 // pred_check
          %p974 = pneg %p196
        $region50: #{tpu_custom_call.1} parent=47 // pred_check_branch
          %976 = sbr.rel (%p974) target = $region52
        $region51: #{tpu_custom_call.1} parent=47 // pred_region
          %978 = vsyncadd %s970, 0
          %s979 = smul.addr %s21, 2
          %s980 = smul.addr %s979, 8
          %s981 = scalar_lea.hbm %s7, %s980
          %s983 = sshll.u32 %s973, 4
          %s984 = int_to_ptr.vmem [resolvable:$true] %s983
          %s985 = sshll.u32 %s981, 4
          %s986 = int_to_ptr.hbm [resolvable:$true] %s985
          %988 = dma.vmem_to_hbm [thread:$0]  %s984, 256, %s986, %s970
        $region52: #{tpu_custom_call.1} parent=47 // pred_fallthru
          _
      $region48: #{tpu_custom_call.1} parent=5 // pred_fallthru
        _
      %p989 = scmp.le.s32.totalorder 2, %s16
      // Predicated region
      $region53: #{tpu_custom_call.1} parent=5 // pred_check
        %p990 = pneg %p989
      $region54: #{tpu_custom_call.1} parent=5 // pred_check_branch
        %992 = sbr.rel (%p990) target = $region56
      $region55: #{tpu_custom_call.1} parent=5 // pred_region
        %s993 = ssub.s32 %s16, 2
        // Predicated region
        $region57: #{tpu_custom_call.1} parent=55 // pred_check
          %p994 = pneg %p202
        $region58: #{tpu_custom_call.1} parent=55 // pred_check_branch
          %996 = sbr.rel (%p994) target = $region60
        $region59: #{tpu_custom_call.1} parent=55 // pred_region
          %s997 = sand.u32 %s187, 1
          %s998 = scalar_lea.sflag [#allocation4], %s997
          %s999 = sand.u32 %s187, 1
          %s1000 = smul.addr %s999, 16
          %s1001 = scalar_lea.vmem [#allocation3], %s1000
          %1003 = dma.done %s998, 256
        $region60: #{tpu_custom_call.1} parent=55 // pred_fallthru
          _
      $region56: #{tpu_custom_call.1} parent=5 // pred_fallthru
        _
    $region6: #{tpu_custom_call.1} parent=1 // loop_footer
      %s20 = sadd.s32 1, %s16
    $region7: #{tpu_custom_call.1} parent=1 // loop_footer_branch
      %15 = sbr.rel target = $region3
    $region8: #{tpu_custom_call.1} parent=1 // loop_exit
      _
    %1004 = vsyncpa [#allocation4], 1
    %s1005 = scalar_lea.sflag [#allocation4], 1
    %1006 = vsyncpa %s1005, 1

</llo_original>
